<compile_context>
chip_gen: v7x
topology: tpu7x:2x2x1
jax: 0.10.0
libtpu: 0.0.40
codegen_flags: <defaults>
</compile_context>

<pallas_src>
import inspect

import jax
import jax.numpy as jnp
from jax.experimental import pallas as pl
from jax.experimental.pallas import tpu as pltpu

D_IN, D_H1, D_H2, D_OUT = 1536, 512, 128, 1


def _round_up(n, m):
    return (n + m - 1) // m * m


def _mlp_kernel(x_ref, w1_ref, b1_ref, w2_ref, b2_ref, w3_ref, b3_ref, o_ref):
    # In-kernel cast to bf16: x streams from HBM at 4 B/elem once, instead of
    # the 8 B/elem (read f32 + write bf16 + re-read bf16) of a wrapper cast.
    xb = x_ref[...].astype(jnp.bfloat16)

    # fc1 + ReLU : (TB,1536)bf16 @ (1536,512)bf16 -> f32 accumulate on the MXU.
    h1 = jnp.dot(xb, w1_ref[...], preferred_element_type=jnp.float32)
    h1 = jnp.maximum(h1 + b1_ref[...], 0.0)

    # fc2 + ReLU : (TB,512)bf16 @ (512,128)bf16 -> f32.
    h2 = jnp.dot(h1.astype(jnp.bfloat16), w2_ref[...],
                 preferred_element_type=jnp.float32)
    h2 = jnp.maximum(h2 + b2_ref[...], 0.0)

    # fc3 (out dim = 1): XLU lane reduction instead of a skinny (128,1) matmul,
    # then a cheap (TB,1)->(1,TB) relayout so bias + sigmoid + store all run
    # lane-dense (unmasked vst instead of TB/8 masked partial stores).
    col = jnp.sum(h2 * w3_ref[...], axis=-1, keepdims=True)   # (TB, 1)
    row = jnp.transpose(col) + b3_ref[0, 0]                   # (1, TB)

    # Sigmoid: exp on the EUP + approximate EUP reciprocal (off the VALU path).
    o_ref[...] = pl.reciprocal(1.0 + jnp.exp(-row), approx=True).astype(o_ref.dtype)


def _choose_batch_tile(batch, block_b):
    """Pick an MXU/layout-friendly batch tile.

    * small B: one tile covering the 16-row-aligned batch -> grid of 1
      (block equals the full padded output dim, so the (1, tb) out block is legal).
    * large B: 128-aligned tiles (keeps the lane-dense (1, tb) output block
      legal) and at least two tiles so v7x's two TensorCores both get work.
    """
    if batch <= 256:
        return _round_up(batch, 16)
    tb = min(block_b, _round_up(pl.cdiv(batch, 2), 128))
    return max(tb, 128)


def _resident_kwargs():
    # Single-buffer the VMEM-resident operands when the installed Pallas
    # supports pipeline_mode (constant index_map => fetched once anyway).
    try:
        if hasattr(pl, "Buffered") and \
                "pipeline_mode" in inspect.signature(pl.BlockSpec).parameters:
            return {"pipeline_mode": pl.Buffered(1)}
    except (TypeError, ValueError):
        pass
    return {}


def multimodal_classifier(x, params, *, block_b=512):
    """x: (B, 1536) float32 (or bfloat16). params: see prepare_params().
    Returns (B, 1) float32 probabilities."""
    w1, b1, w2, b2, w3, b3 = params
    B = x.shape[0]

    tb = _choose_batch_tile(B, block_b)
    grid_b = pl.cdiv(B, tb)
    padded_b = grid_b * tb  # x is NOT padded: the last grid block is partial.

    rk = _resident_kwargs()

    def resident(shape):
        # Constant block index => DMA'd once, VMEM-resident across batch steps.
        return pl.BlockSpec(shape, lambda *_: (0,) * len(shape), **rk)

    out = pl.pallas_call(
        _mlp_kernel,
        out_shape=jax.ShapeDtypeStruct((1, padded_b), jnp.float32),
        grid=(grid_b,),
        in_specs=[
            # x tile streamed through double-buffered VMEM; the last block may
            # read past B (garbage rows -> their outputs are sliced away).
            pl.BlockSpec((tb, D_IN), lambda i: (i, 0)),
            resident((D_IN, D_H1)),                              # w1 (bf16)
            resident((1, D_H1)),                                 # b1 (f32)
            resident((D_H1, D_H2)),                              # w2 (bf16)
            resident((1, D_H2)),                                 # b2 (f32)
            resident((1, D_H2)),                                 # w3 row (f32)
            pl.BlockSpec(memory_space=pltpu.MemorySpace.SMEM),   # b3 (1,1) scalar
        ],
        out_specs=pl.BlockSpec((1, tb), lambda i: (0, i)),       # lane-dense out
        compiler_params=pltpu.CompilerParams(
            dimension_semantics=("parallel",),   # shard batch over v7x's 2 TCs
            vmem_limit_bytes=32 << 20,           # right-sized for v7x's 64 MiB
        ),
    )(x, w1, b1, w2, b2, w3, b3)

    return out[0, :B][:, None]


def init_params(key):
    """Deterministic synthetic parameters matching nn.Linear shapes (f32)."""
    k1, k2, k3, k4, k5, k6 = jax.random.split(key, 6)
    # PyTorch Linear weight is (out, in); we keep (in, out) for x @ W.
    w1 = jax.random.normal(k1, (D_IN, D_H1), jnp.float32) * (1.0 / jnp.sqrt(D_IN))
    b1 = jax.random.normal(k2, (1, D_H1), jnp.float32) * 0.01
    w2 = jax.random.normal(k3, (D_H1, D_H2), jnp.float32) * (1.0 / jnp.sqrt(D_H1))
    b2 = jax.random.normal(k4, (1, D_H2), jnp.float32) * 0.01
    w3 = jax.random.normal(k5, (1, D_H2), jnp.float32) * (1.0 / jnp.sqrt(D_H2))
    b3 = jax.random.normal(k6, (1, 1), jnp.float32) * 0.01
    return (w1, b1, w2, b2, w3, b3)


def prepare_params(params):
    """One-time conversion to kernel dtypes: bf16 matmul weights, f32 biases."""
    w1, b1, w2, b2, w3, b3 = params
    return (w1.astype(jnp.bfloat16), b1,
            w2.astype(jnp.bfloat16), b2,
            w3, b3)


def reference(x, params):
    w1, b1, w2, b2, w3, b3 = params
    h1 = jnp.maximum(x @ w1 + b1, 0.0)
    h2 = jnp.maximum(h1 @ w2 + b2, 0.0)
    return jax.nn.sigmoid(h2 @ w3.T + b3)


if __name__ == "__main__":
    key = jax.random.PRNGKey(0)
    kx, kp = jax.random.split(key)
    params = init_params(kp)
    kparams = prepare_params(params)

    # Small batch: grid of 1, partial x block (8 valid rows in a 16-row tile).
    B = 8
    x = jax.random.normal(kx, (B, D_IN), jnp.float32)
    out = jax.block_until_ready(multimodal_classifier(x, kparams))
    ref = reference(x, params)
    assert out.shape == (B, D_OUT), out.shape
    # bf16 matmul operands (f32 accumulation) => loosened tolerance vs f32 ref.
    assert jnp.allclose(out, ref, atol=2e-2, rtol=2e-2), (out, ref)

    # Multi-tile ragged batch: two 256-row tiles (megacore-parallel grid),
    # partial last block, lane-dense (1, tb) output path.
    B2 = 300
    x2 = jax.random.normal(jax.random.PRNGKey(1), (B2, D_IN), jnp.float32)
    out2 = jax.block_until_ready(multimodal_classifier(x2, kparams))
    ref2 = reference(x2, params)
    assert out2.shape == (B2, D_OUT), out2.shape
    assert jnp.allclose(out2, ref2, atol=2e-2, rtol=2e-2), (out2, ref2)

    print("KERNEL_OK")
</pallas_src>

<mosaic_0001>
module attributes {stable_mosaic.version = 11 : i64} {
  func.func @_mlp_kernel(%arg0: i32, %arg1: memref<16x1536xf32, #tpu.memory_space<vmem>>, %arg2: memref<1536x512xbf16, #tpu.memory_space<vmem>>, %arg3: memref<1x512xf32, #tpu.memory_space<vmem>>, %arg4: memref<512x128xbf16, #tpu.memory_space<vmem>>, %arg5: memref<1x128xf32, #tpu.memory_space<vmem>>, %arg6: memref<1x128xf32, #tpu.memory_space<vmem>>, %arg7: memref<1x1xf32, #tpu.memory_space<smem>>, %arg8: memref<1x16xf32, #tpu.memory_space<vmem>>) attributes {dimension_semantics = [#tpu.dimension_semantics<parallel>], iteration_bounds = array<i64: 1>, scalar_prefetch = 0 : i64, scratch_operands = 0 : i64, tpu.core_type = #tpu.core_type<tc>, window_params = [{transform_indices = @transform_0, window_bounds = array<i64: 16, 1536>}, {pipeline_mode = #tpu.pipeline_mode<synchronous>, transform_indices = @transform_1, window_bounds = array<i64: 1536, 512>}, {pipeline_mode = #tpu.pipeline_mode<synchronous>, transform_indices = @transform_2, window_bounds = array<i64: 1, 512>}, {pipeline_mode = #tpu.pipeline_mode<synchronous>, transform_indices = @transform_3, window_bounds = array<i64: 512, 128>}, {pipeline_mode = #tpu.pipeline_mode<synchronous>, transform_indices = @transform_4, window_bounds = array<i64: 1, 128>}, {pipeline_mode = #tpu.pipeline_mode<synchronous>, transform_indices = @transform_5, window_bounds = array<i64: 1, 128>}, {transform_indices = @transform_6, window_bounds = array<i64: 1, 1>}, {transform_indices = @transform_7, window_bounds = array<i64: 1, 16>}]} {
    %c0 = arith.constant 0 : index
    %c0_0 = arith.constant 0 : index
    %0 = vector.load %arg1[%c0, %c0_0] : memref<16x1536xf32, #tpu.memory_space<vmem>>, vector<16x1536xf32>
    %1 = arith.truncf %0 : vector<16x1536xf32> to vector<16x1536xbf16>
    %c0_1 = arith.constant 0 : index
    %c0_2 = arith.constant 0 : index
    %2 = vector.load %arg2[%c0_1, %c0_2] : memref<1536x512xbf16, #tpu.memory_space<vmem>>, vector<1536x512xbf16>
    %cst = arith.constant dense<0.000000e+00> : vector<16x512xf32>
    %3 = tpu.matmul %1, %2, %cst {dimension_numbers = #tpu.dot_dimension_numbers<[1], [0], [0], [1], [0, 0, 1, 1], [], []>} : vector<16x1536xbf16>, vector<1536x512xbf16>, vector<16x512xf32> -> vector<16x512xf32>
    %c0_3 = arith.constant 0 : index
    %c0_4 = arith.constant 0 : index
    %4 = vector.load %arg3[%c0_3, %c0_4] : memref<1x512xf32, #tpu.memory_space<vmem>>, vector<1x512xf32>
    %5 = vector.broadcast %4 : vector<1x512xf32> to vector<16x512xf32>
    %6 = arith.addf %3, %5 : vector<16x512xf32>
    %cst_5 = arith.constant 0.000000e+00 : f32
    %7 = vector.broadcast %cst_5 : f32 to vector<16x512xf32>
    %8 = arith.maximumf %6, %7 : vector<16x512xf32>
    %9 = arith.truncf %8 : vector<16x512xf32> to vector<16x512xbf16>
    %c0_6 = arith.constant 0 : index
    %c0_7 = arith.constant 0 : index
    %10 = vector.load %arg4[%c0_6, %c0_7] : memref<512x128xbf16, #tpu.memory_space<vmem>>, vector<512x128xbf16>
    %cst_8 = arith.constant dense<0.000000e+00> : vector<16x128xf32>
    %11 = tpu.matmul %9, %10, %cst_8 {dimension_numbers = #tpu.dot_dimension_numbers<[1], [0], [0], [1], [0, 0, 1, 1], [], []>} : vector<16x512xbf16>, vector<512x128xbf16>, vector<16x128xf32> -> vector<16x128xf32>
    %c0_9 = arith.constant 0 : index
    %c0_10 = arith.constant 0 : index
    %12 = vector.load %arg5[%c0_9, %c0_10] : memref<1x128xf32, #tpu.memory_space<vmem>>, vector<1x128xf32>
    %13 = vector.broadcast %12 : vector<1x128xf32> to vector<16x128xf32>
    %14 = arith.addf %11, %13 : vector<16x128xf32>
    %cst_11 = arith.constant 0.000000e+00 : f32
    %15 = vector.broadcast %cst_11 : f32 to vector<16x128xf32>
    %16 = arith.maximumf %14, %15 : vector<16x128xf32>
    %c0_12 = arith.constant 0 : index
    %c0_13 = arith.constant 0 : index
    %17 = vector.load %arg6[%c0_12, %c0_13] : memref<1x128xf32, #tpu.memory_space<vmem>>, vector<1x128xf32>
    %18 = vector.broadcast %17 : vector<1x128xf32> to vector<16x128xf32>
    %19 = arith.mulf %16, %18 : vector<16x128xf32>
    %cst_14 = arith.constant dense<0.000000e+00> : vector<16xf32>
    %20 = vector.multi_reduction <add>, %19, %cst_14 [1] : vector<16x128xf32> to vector<16xf32>
    %21 = vector.shape_cast %20 : vector<16xf32> to vector<16x1xf32>
    %22 = tpu.transpose %21, [1, 0] : vector<16x1xf32> -> vector<1x16xf32>
    %c0_15 = arith.constant 0 : index
    %c0_16 = arith.constant 0 : index
    %23 = memref.load %arg7[%c0_15, %c0_16] : memref<1x1xf32, #tpu.memory_space<smem>>
    %24 = vector.broadcast %23 : f32 to vector<1x16xf32>
    %25 = arith.addf %22, %24 : vector<1x16xf32>
    %cst_17 = arith.constant 0.000000e+00 : f32
    %26 = vector.broadcast %cst_17 : f32 to vector<1x16xf32>
    %27 = arith.subf %26, %25 : vector<1x16xf32>
    %28 = math.exp %27 : vector<1x16xf32>
    %cst_18 = arith.constant 1.000000e+00 : f32
    %29 = vector.broadcast %cst_18 : f32 to vector<1x16xf32>
    %30 = arith.addf %29, %28 : vector<1x16xf32>
    %31 = tpu.reciprocal %30 {approx = true} : vector<1x16xf32> -> vector<1x16xf32>
    %c0_19 = arith.constant 0 : index
    %c0_20 = arith.constant 0 : index
    %32 = vector.load %arg8[%c0_19, %c0_20] : memref<1x16xf32, #tpu.memory_space<vmem>>, vector<1x16xf32>
    tpu.vector_store %arg8[%c0_19, %c0_20], %31 {strides = array<i32>} : memref<1x16xf32, #tpu.memory_space<vmem>>, vector<1x16xf32>,
    return
  }
  func.func @transform_0(%arg0: i32) -> (i32, i32) {
    %c0_i32 = arith.constant 0 : i32
    %c0_i32_0 = arith.constant 0 : i32
    return %arg0, %c0_i32 : i32, i32
  }
  func.func @transform_1(%arg0: i32) -> (i32, i32) {
    %c0_i32 = arith.constant 0 : i32
    %c0_i32_0 = arith.constant 0 : i32
    %c0_i32_1 = arith.constant 0 : i32
    return %c0_i32, %c0_i32_0 : i32, i32
  }
  func.func @transform_2(%arg0: i32) -> (i32, i32) {
    %c0_i32 = arith.constant 0 : i32
    %c0_i32_0 = arith.constant 0 : i32
    %c0_i32_1 = arith.constant 0 : i32
    return %c0_i32, %c0_i32_0 : i32, i32
  }
  func.func @transform_3(%arg0: i32) -> (i32, i32) {
    %c0_i32 = arith.constant 0 : i32
    %c0_i32_0 = arith.constant 0 : i32
    %c0_i32_1 = arith.constant 0 : i32
    return %c0_i32, %c0_i32_0 : i32, i32
  }
  func.func @transform_4(%arg0: i32) -> (i32, i32) {
    %c0_i32 = arith.constant 0 : i32
    %c0_i32_0 = arith.constant 0 : i32
    %c0_i32_1 = arith.constant 0 : i32
    return %c0_i32, %c0_i32_0 : i32, i32
  }
  func.func @transform_5(%arg0: i32) -> (i32, i32) {
    %c0_i32 = arith.constant 0 : i32
    %c0_i32_0 = arith.constant 0 : i32
    %c0_i32_1 = arith.constant 0 : i32
    return %c0_i32, %c0_i32_0 : i32, i32
  }
  func.func @transform_6(%arg0: i32) -> (i32, i32) {
    %c0_i32 = arith.constant 0 : i32
    %c0_i32_0 = arith.constant 0 : i32
    %c0_i32_1 = arith.constant 0 : i32
    return %c0_i32, %c0_i32_0 : i32, i32
  }
  func.func @transform_7(%arg0: i32) -> (i32, i32) {
    %c0_i32 = arith.constant 0 : i32
    %c0_i32_0 = arith.constant 0 : i32
    return %c0_i32, %arg0 : i32, i32
  }
}

</mosaic_0001>

<llo_original>
// kernel: tpu_custom_call.1
$region0: #{tpu_custom_call.1}
  #allocation0 [shape = 'u32[]', space=smem, size = 0x4, offset = 0x4, fixed_abs, tag = 'smem constant byte address 0x4 - core index']
  #allocation1 [shape = 'u32[144,128]{1,0:T(1,128)}', space=vmem, size = 0x12000, scoped, tag = 'internal scratch']
  #allocation2 [shape = 'f32[1,1]{1,0:T(1,128)S(6)}', space=smem, size = 0x200, scoped, tag = 'scoped memory for tpu_custom_call.1']
  %s0 = inlined_call_operand.hbm [shape: f32[8,1536], index: 0, kind: input, shape index: {}]
  %s1 = inlined_call_operand.hbm [shape: bf16[1536,512], index: 1, kind: input, shape index: {}]
  %s2 = inlined_call_operand.hbm [shape: f32[1,512], index: 2, kind: input, shape index: {}]
  %s3 = inlined_call_operand.hbm [shape: bf16[512,128], index: 3, kind: input, shape index: {}]
  %s4 = inlined_call_operand.hbm [shape: f32[1,128], index: 4, kind: input, shape index: {}]
  %s5 = inlined_call_operand.hbm [shape: f32[1,128], index: 5, kind: input, shape index: {}]
  %s6 = inlined_call_operand.<no memory space> [shape: f32[1,1], index: 6, kind: input, shape index: {}]
  %s7 = inlined_call_operand.hbm [shape: f32[1,16], index: 7, kind: output, shape index: {}]
  %s8 = sld [smem:[#allocation0]]
  $region62: #{tpu_custom_call.1} parent=0
    _
  %s10 = ssub.s32 1, %s8
  %s11 = scalar_select 0, %s10, %s8
  %12 = sst [smem:[#allocation2]] %s6
  $region1: #{tpu_custom_call.1} parent=0
    #allocation3 [shape = 'u8[98304]{0}', space=vmem, size = 0x18000, scoped, tag = 'input window, operand 0, single buffered']
    #allocation4 [shape = 's32[1]{0}', space=sflag, size = 0x4, scoped, tag = 'scoped memory for tpu_custom_call.1']
    #allocation5 [shape = 's32[1]{0}', space=sflag, size = 0x4, scoped, tag = 'scoped memory for tpu_custom_call.1']
    #allocation6 [shape = 'u8[1572864]{0}', space=vmem, size = 0x180000, scoped, tag = 'input window, operand 1, single buffered']
    #allocation7 [shape = 's32[1]{0}', space=sflag, size = 0x4, scoped, tag = 'scoped memory for tpu_custom_call.1']
    #allocation8 [shape = 'u8[2048]{0}', space=vmem, size = 0x800, scoped, tag = 'input window, operand 2, single buffered']
    #allocation9 [shape = 'u8[131072]{0}', space=vmem, size = 0x20000, scoped, tag = 'input window, operand 3, single buffered']
    #allocation10 [shape = 's32[1]{0}', space=sflag, size = 0x4, scoped, tag = 'scoped memory for tpu_custom_call.1']
    #allocation11 [shape = 'u8[512]{0}', space=vmem, size = 0x400, scoped, tag = 'input window, operand 4, single buffered']
    #allocation12 [shape = 'u8[512]{0}', space=vmem, size = 0x400, scoped, tag = 'input window, operand 5, single buffered']
    #allocation13 [shape = 's32[1]{0}', space=sflag, size = 0x4, scoped, tag = 'scoped memory for tpu_custom_call.1']
    #allocation14 [shape = 'u8[512]{0}', space=vmem, size = 0x400, scoped, tag = 'output window, operand 0, single buffered']
    %13 = vsyncpa [#allocation4], 0
    %14 = vsyncpa [#allocation7], 0
    %15 = vsyncpa [#allocation10], 0
    %16 = vsyncpa [#allocation13], 0
    %17 = vsyncpa [#allocation5], 0
    // Predicated region
    $region2: #{tpu_custom_call.1} parent=1 // pred_check
      _
    $region3: #{tpu_custom_call.1} parent=1 // pred_check_branch
      %19 = sbr.rel (0) target = $region5
    $region4: #{tpu_custom_call.1} parent=1 // pred_region
      %s21 = ssub.s32 3072, 1536
      %22 = vsyncadd [#allocation4], %s21
      %s23 = sshll.u32 [#allocation3], 4
      %s24 = int_to_ptr.vmem [resolvable:$true] %s23
      %29 = dma.hbm_to_vmem [thread:$0]  %s0, 1536, %s24, [#allocation4], 1536, 1536, 96
    $region5: #{tpu_custom_call.1} parent=1 // pred_fallthru
      _
    // Predicated region
    $region6: #{tpu_custom_call.1} parent=1 // pred_check
      _
    $region7: #{tpu_custom_call.1} parent=1 // pred_check_branch
      %31 = sbr.rel (0) target = $region9
    $region8: #{tpu_custom_call.1} parent=1 // pred_region
      %s33 = ssub.s32 49152, 49152
      %34 = vsyncadd [#allocation7], %s33
      %s35 = sshll.u32 [#allocation6], 4
      %s36 = int_to_ptr.vmem [resolvable:$true] %s35
      %41 = dma.hbm_to_vmem [thread:$0]  %s1, 49152, %s36, [#allocation7], 256, 256, 16
    $region9: #{tpu_custom_call.1} parent=1 // pred_fallthru
      _
    // Predicated region
    $region10: #{tpu_custom_call.1} parent=1 // pred_check
      _
    $region11: #{tpu_custom_call.1} parent=1 // pred_check_branch
      %43 = sbr.rel (0) target = $region13
    $region12: #{tpu_custom_call.1} parent=1 // pred_region
      %s45 = ssub.s32 64, 64
      %46 = vsyncadd [#allocation7], %s45
      %s48 = sshll.u32 [#allocation8], 4
      %s49 = int_to_ptr.vmem [resolvable:$true] %s48
      %51 = dma.hbm_to_vmem [thread:$0]  %s2, 64, %s49, [#allocation7]
    $region13: #{tpu_custom_call.1} parent=1 // pred_fallthru
      _
    // Predicated region
    $region14: #{tpu_custom_call.1} parent=1 // pred_check
      _
    $region15: #{tpu_custom_call.1} parent=1 // pred_check_branch
      %53 = sbr.rel (0) target = $region17
    $region16: #{tpu_custom_call.1} parent=1 // pred_region
      %s55 = ssub.s32 4096, 4096
      %56 = vsyncadd [#allocation10], %s55
      %s57 = sshll.u32 [#allocation9], 4
      %s58 = int_to_ptr.vmem [resolvable:$true] %s57
      %63 = dma.hbm_to_vmem [thread:$0]  %s3, 4096, %s58, [#allocation10], 64, 64, 4
    $region17: #{tpu_custom_call.1} parent=1 // pred_fallthru
      _
    // Predicated region
    $region18: #{tpu_custom_call.1} parent=1 // pred_check
      _
    $region19: #{tpu_custom_call.1} parent=1 // pred_check_branch
      %65 = sbr.rel (0) target = $region21
    $region20: #{tpu_custom_call.1} parent=1 // pred_region
      %s67 = ssub.s32 16, 16
      %68 = vsyncadd [#allocation10], %s67
      %s70 = sshll.u32 [#allocation11], 4
      %s71 = int_to_ptr.vmem [resolvable:$true] %s70
      %73 = dma.hbm_to_vmem [thread:$0]  %s4, 16, %s71, [#allocation10]
    $region21: #{tpu_custom_call.1} parent=1 // pred_fallthru
      _
    // Predicated region
    $region22: #{tpu_custom_call.1} parent=1 // pred_check
      _
    $region23: #{tpu_custom_call.1} parent=1 // pred_check_branch
      %75 = sbr.rel (0) target = $region25
    $region24: #{tpu_custom_call.1} parent=1 // pred_region
      %s77 = ssub.s32 16, 16
      %78 = vsyncadd [#allocation13], %s77
      %s80 = sshll.u32 [#allocation12], 4
      %s81 = int_to_ptr.vmem [resolvable:$true] %s80
      %83 = dma.hbm_to_vmem [thread:$0]  %s5, 16, %s81, [#allocation13]
    $region25: #{tpu_custom_call.1} parent=1 // pred_fallthru
      _
    // Predicated region
    $region26: #{tpu_custom_call.1} parent=1 // pred_check
      _
    $region27: #{tpu_custom_call.1} parent=1 // pred_check_branch
      %85 = sbr.rel (0) target = $region29
    $region28: #{tpu_custom_call.1} parent=1 // pred_region
      _
    $region29: #{tpu_custom_call.1} parent=1 // pred_fallthru
      _
    // Predicated region
    $region30: #{tpu_custom_call.1} parent=1 // pred_check
      _
    $region31: #{tpu_custom_call.1} parent=1 // pred_check_branch
      %87 = sbr.rel (0) target = $region33
    $region32: #{tpu_custom_call.1} parent=1 // pred_region
      %88 = dma.done [#allocation4], 3072
    $region33: #{tpu_custom_call.1} parent=1 // pred_fallthru
      _
    // Predicated region
    $region34: #{tpu_custom_call.1} parent=1 // pred_check
      _
    $region35: #{tpu_custom_call.1} parent=1 // pred_check_branch
      %90 = sbr.rel (0) target = $region37
    $region36: #{tpu_custom_call.1} parent=1 // pred_region
      %91 = dma.done [#allocation7], 49152
    $region37: #{tpu_custom_call.1} parent=1 // pred_fallthru
      _
    // Predicated region
    $region38: #{tpu_custom_call.1} parent=1 // pred_check
      _
    $region39: #{tpu_custom_call.1} parent=1 // pred_check_branch
      %93 = sbr.rel (0) target = $region41
    $region40: #{tpu_custom_call.1} parent=1 // pred_region
      %94 = dma.done [#allocation7], 64
    $region41: #{tpu_custom_call.1} parent=1 // pred_fallthru
      _
    // Predicated region
    $region42: #{tpu_custom_call.1} parent=1 // pred_check
      _
    $region43: #{tpu_custom_call.1} parent=1 // pred_check_branch
      %96 = sbr.rel (0) target = $region45
    $region44: #{tpu_custom_call.1} parent=1 // pred_region
      %97 = dma.done [#allocation10], 4096
    $region45: #{tpu_custom_call.1} parent=1 // pred_fallthru
      _
    // Predicated region
    $region46: #{tpu_custom_call.1} parent=1 // pred_check
      _
    $region47: #{tpu_custom_call.1} parent=1 // pred_check_branch
      %99 = sbr.rel (0) target = $region49
    $region48: #{tpu_custom_call.1} parent=1 // pred_region
      %100 = dma.done [#allocation10], 16
    $region49: #{tpu_custom_call.1} parent=1 // pred_fallthru
      _
    // Predicated region
    $region50: #{tpu_custom_call.1} parent=1 // pred_check
      _
    $region51: #{tpu_custom_call.1} parent=1 // pred_check_branch
      %102 = sbr.rel (0) target = $region53
    $region52: #{tpu_custom_call.1} parent=1 // pred_region
      %103 = dma.done [#allocation13], 16
    $region53: #{tpu_custom_call.1} parent=1 // pred_fallthru
      _
    %v105 = vld [vmem:[#allocation3] sm:$0xff]
    %v106 = vld [vmem:[#allocation3 + $0x8] sm:$0xff]
    %v107 = vld [vmem:[#allocation3 + $0x10] sm:$0xff]
    %v108 = vld [vmem:[#allocation3 + $0x18] sm:$0xff]
    %v109 = vld [vmem:[#allocation3 + $0x20] sm:$0xff]
    %v110 = vld [vmem:[#allocation3 + $0x28] sm:$0xff]
    %v111 = vld [vmem:[#allocation3 + $0x30] sm:$0xff]
    %v112 = vld [vmem:[#allocation3 + $0x38] sm:$0xff]
    %v113 = vld [vmem:[#allocation3 + $0x40] sm:$0xff]
    %v114 = vld [vmem:[#allocation3 + $0x48] sm:$0xff]
    %v115 = vld [vmem:[#allocation3 + $0x50] sm:$0xff]
    %v116 = vld [vmem:[#allocation3 + $0x58] sm:$0xff]
    %v117 = vld [vmem:[#allocation3 + $0x60] sm:$0xff]
    %v118 = vld [vmem:[#allocation3 + $0x68] sm:$0xff]
    %v119 = vld [vmem:[#allocation3 + $0x70] sm:$0xff]
    %v120 = vld [vmem:[#allocation3 + $0x78] sm:$0xff]
    %v121 = vld [vmem:[#allocation3 + $0x80] sm:$0xff]
    %v122 = vld [vmem:[#allocation3 + $0x88] sm:$0xff]
    %v123 = vld [vmem:[#allocation3 + $0x90] sm:$0xff]
    %v124 = vld [vmem:[#allocation3 + $0x98] sm:$0xff]
    %v125 = vld [vmem:[#allocation3 + $0xa0] sm:$0xff]
    %v126 = vld [vmem:[#allocation3 + $0xa8] sm:$0xff]
    %v127 = vld [vmem:[#allocation3 + $0xb0] sm:$0xff]
    %v128 = vld [vmem:[#allocation3 + $0xb8] sm:$0xff]
    %v129 = vpack.c.bf16 %v117, %v105
    %v130 = vpack.c.bf16 %v118, %v106
    %v131 = vpack.c.bf16 %v119, %v107
    %v132 = vpack.c.bf16 %v120, %v108
    %v133 = vpack.c.bf16 %v121, %v109
    %v134 = vpack.c.bf16 %v122, %v110
    %v135 = vpack.c.bf16 %v123, %v111
    %v136 = vpack.c.bf16 %v124, %v112
    %v137 = vpack.c.bf16 %v125, %v113
    %v138 = vpack.c.bf16 %v126, %v114
    %v139 = vpack.c.bf16 %v127, %v115
    %v140 = vpack.c.bf16 %v128, %v116
    %v141 = vld [vmem:[#allocation6] sm:$0xff]
    %v142 = vld [vmem:[#allocation6 + $0x8] sm:$0xff]
    %v143 = vld [vmem:[#allocation6 + $0x10] sm:$0xff]
    %v144 = vld [vmem:[#allocation6 + $0x18] sm:$0xff]
    %v145 = vld [vmem:[#allocation6 + $0x20] sm:$0xff]
    %v146 = vld [vmem:[#allocation6 + $0x28] sm:$0xff]
    %v147 = vld [vmem:[#allocation6 + $0x30] sm:$0xff]
    %v148 = vld [vmem:[#allocation6 + $0x38] sm:$0xff]
    %v149 = vld [vmem:[#allocation6 + $0x40] sm:$0xff]
    %v150 = vld [vmem:[#allocation6 + $0x48] sm:$0xff]
    %v151 = vld [vmem:[#allocation6 + $0x50] sm:$0xff]
    %v152 = vld [vmem:[#allocation6 + $0x58] sm:$0xff]
    %v153 = vld [vmem:[#allocation6 + $0x60] sm:$0xff]
    %v154 = vld [vmem:[#allocation6 + $0x68] sm:$0xff]
    %v155 = vld [vmem:[#allocation6 + $0x70] sm:$0xff]
    %v156 = vld [vmem:[#allocation6 + $0x78] sm:$0xff]
    %v157 = vld [vmem:[#allocation6 + $0x80] sm:$0xff]
    %v158 = vld [vmem:[#allocation6 + $0x88] sm:$0xff]
    %v159 = vld [vmem:[#allocation6 + $0x90] sm:$0xff]
    %v160 = vld [vmem:[#allocation6 + $0x98] sm:$0xff]
    %v161 = vld [vmem:[#allocation6 + $0xa0] sm:$0xff]
    %v162 = vld [vmem:[#allocation6 + $0xa8] sm:$0xff]
    %v163 = vld [vmem:[#allocation6 + $0xb0] sm:$0xff]
    %v164 = vld [vmem:[#allocation6 + $0xb8] sm:$0xff]
    %v165 = vld [vmem:[#allocation6 + $0xc0] sm:$0xff]
    %v166 = vld [vmem:[#allocation6 + $0xc8] sm:$0xff]
    %v167 = vld [vmem:[#allocation6 + $0xd0] sm:$0xff]
    %v168 = vld [vmem:[#allocation6 + $0xd8] sm:$0xff]
    %v169 = vld [vmem:[#allocation6 + $0xe0] sm:$0xff]
    %v170 = vld [vmem:[#allocation6 + $0xe8] sm:$0xff]
    %v171 = vld [vmem:[#allocation6 + $0xf0] sm:$0xff]
    %v172 = vld [vmem:[#allocation6 + $0xf8] sm:$0xff]
    %v173 = vld [vmem:[#allocation6 + $0x100] sm:$0xff]
    %v174 = vld [vmem:[#allocation6 + $0x108] sm:$0xff]
    %v175 = vld [vmem:[#allocation6 + $0x110] sm:$0xff]
    %v176 = vld [vmem:[#allocation6 + $0x118] sm:$0xff]
    %v177 = vld [vmem:[#allocation6 + $0x120] sm:$0xff]
    %v178 = vld [vmem:[#allocation6 + $0x128] sm:$0xff]
    %v179 = vld [vmem:[#allocation6 + $0x130] sm:$0xff]
    %v180 = vld [vmem:[#allocation6 + $0x138] sm:$0xff]
    %v181 = vld [vmem:[#allocation6 + $0x140] sm:$0xff]
    %v182 = vld [vmem:[#allocation6 + $0x148] sm:$0xff]
    %v183 = vld [vmem:[#allocation6 + $0x150] sm:$0xff]
    %v184 = vld [vmem:[#allocation6 + $0x158] sm:$0xff]
    %v185 = vld [vmem:[#allocation6 + $0x160] sm:$0xff]
    %v186 = vld [vmem:[#allocation6 + $0x168] sm:$0xff]
    %v187 = vld [vmem:[#allocation6 + $0x170] sm:$0xff]
    %v188 = vld [vmem:[#allocation6 + $0x178] sm:$0xff]
    %v189 = vld [vmem:[#allocation6 + $0x180] sm:$0xff]
    %v190 = vld [vmem:[#allocation6 + $0x188] sm:$0xff]
    %v191 = vld [vmem:[#allocation6 + $0x190] sm:$0xff]
    %v192 = vld [vmem:[#allocation6 + $0x198] sm:$0xff]
    %v193 = vld [vmem:[#allocation6 + $0x1a0] sm:$0xff]
    %v194 = vld [vmem:[#allocation6 + $0x1a8] sm:$0xff]
    %v195 = vld [vmem:[#allocation6 + $0x1b0] sm:$0xff]
    %v196 = vld [vmem:[#allocation6 + $0x1b8] sm:$0xff]
    %v197 = vld [vmem:[#allocation6 + $0x1c0] sm:$0xff]
    %v198 = vld [vmem:[#allocation6 + $0x1c8] sm:$0xff]
    %v199 = vld [vmem:[#allocation6 + $0x1d0] sm:$0xff]
    %v200 = vld [vmem:[#allocation6 + $0x1d8] sm:$0xff]
    %v201 = vld [vmem:[#allocation6 + $0x1e0] sm:$0xff]
    %v202 = vld [vmem:[#allocation6 + $0x1e8] sm:$0xff]
    %v203 = vld [vmem:[#allocation6 + $0x1f0] sm:$0xff]
    %v204 = vld [vmem:[#allocation6 + $0x1f8] sm:$0xff]
    %v205 = vld [vmem:[#allocation6 + $0x200] sm:$0xff]
    %v206 = vld [vmem:[#allocation6 + $0x208] sm:$0xff]
    %v207 = vld [vmem:[#allocation6 + $0x210] sm:$0xff]
    %v208 = vld [vmem:[#allocation6 + $0x218] sm:$0xff]
    %v209 = vld [vmem:[#allocation6 + $0x220] sm:$0xff]
    %v210 = vld [vmem:[#allocation6 + $0x228] sm:$0xff]
    %v211 = vld [vmem:[#allocation6 + $0x230] sm:$0xff]
    %v212 = vld [vmem:[#allocation6 + $0x238] sm:$0xff]
    %v213 = vld [vmem:[#allocation6 + $0x240] sm:$0xff]
    %v214 = vld [vmem:[#allocation6 + $0x248] sm:$0xff]
    %v215 = vld [vmem:[#allocation6 + $0x250] sm:$0xff]
    %v216 = vld [vmem:[#allocation6 + $0x258] sm:$0xff]
    %v217 = vld [vmem:[#allocation6 + $0x260] sm:$0xff]
    %v218 = vld [vmem:[#allocation6 + $0x268] sm:$0xff]
    %v219 = vld [vmem:[#allocation6 + $0x270] sm:$0xff]
    %v220 = vld [vmem:[#allocation6 + $0x278] sm:$0xff]
    %v221 = vld [vmem:[#allocation6 + $0x280] sm:$0xff]
    %v222 = vld [vmem:[#allocation6 + $0x288] sm:$0xff]
    %v223 = vld [vmem:[#allocation6 + $0x290] sm:$0xff]
    %v224 = vld [vmem:[#allocation6 + $0x298] sm:$0xff]
    %v225 = vld [vmem:[#allocation6 + $0x2a0] sm:$0xff]
    %v226 = vld [vmem:[#allocation6 + $0x2a8] sm:$0xff]
    %v227 = vld [vmem:[#allocation6 + $0x2b0] sm:$0xff]
    %v228 = vld [vmem:[#allocation6 + $0x2b8] sm:$0xff]
    %v229 = vld [vmem:[#allocation6 + $0x2c0] sm:$0xff]
    %v230 = vld [vmem:[#allocation6 + $0x2c8] sm:$0xff]
    %v231 = vld [vmem:[#allocation6 + $0x2d0] sm:$0xff]
    %v232 = vld [vmem:[#allocation6 + $0x2d8] sm:$0xff]
    %v233 = vld [vmem:[#allocation6 + $0x2e0] sm:$0xff]
    %v234 = vld [vmem:[#allocation6 + $0x2e8] sm:$0xff]
    %v235 = vld [vmem:[#allocation6 + $0x2f0] sm:$0xff]
    %v236 = vld [vmem:[#allocation6 + $0x2f8] sm:$0xff]
    %v237 = vld [vmem:[#allocation6 + $0x300] sm:$0xff]
    %v238 = vld [vmem:[#allocation6 + $0x308] sm:$0xff]
    %v239 = vld [vmem:[#allocation6 + $0x310] sm:$0xff]
    %v240 = vld [vmem:[#allocation6 + $0x318] sm:$0xff]
    %v241 = vld [vmem:[#allocation6 + $0x320] sm:$0xff]
    %v242 = vld [vmem:[#allocation6 + $0x328] sm:$0xff]
    %v243 = vld [vmem:[#allocation6 + $0x330] sm:$0xff]
    %v244 = vld [vmem:[#allocation6 + $0x338] sm:$0xff]
    %v245 = vld [vmem:[#allocation6 + $0x340] sm:$0xff]
    %v246 = vld [vmem:[#allocation6 + $0x348] sm:$0xff]
    %v247 = vld [vmem:[#allocation6 + $0x350] sm:$0xff]
    %v248 = vld [vmem:[#allocation6 + $0x358] sm:$0xff]
    %v249 = vld [vmem:[#allocation6 + $0x360] sm:$0xff]
    %v250 = vld [vmem:[#allocation6 + $0x368] sm:$0xff]
    %v251 = vld [vmem:[#allocation6 + $0x370] sm:$0xff]
    %v252 = vld [vmem:[#allocation6 + $0x378] sm:$0xff]
    %v253 = vld [vmem:[#allocation6 + $0x380] sm:$0xff]
    %v254 = vld [vmem:[#allocation6 + $0x388] sm:$0xff]
    %v255 = vld [vmem:[#allocation6 + $0x390] sm:$0xff]
    %v256 = vld [vmem:[#allocation6 + $0x398] sm:$0xff]
    %v257 = vld [vmem:[#allocation6 + $0x3a0] sm:$0xff]
    %v258 = vld [vmem:[#allocation6 + $0x3a8] sm:$0xff]
    %v259 = vld [vmem:[#allocation6 + $0x3b0] sm:$0xff]
    %v260 = vld [vmem:[#allocation6 + $0x3b8] sm:$0xff]
    %v261 = vld [vmem:[#allocation6 + $0x3c0] sm:$0xff]
    %v262 = vld [vmem:[#allocation6 + $0x3c8] sm:$0xff]
    %v263 = vld [vmem:[#allocation6 + $0x3d0] sm:$0xff]
    %v264 = vld [vmem:[#allocation6 + $0x3d8] sm:$0xff]
    %v265 = vld [vmem:[#allocation6 + $0x3e0] sm:$0xff]
    %v266 = vld [vmem:[#allocation6 + $0x3e8] sm:$0xff]
    %v267 = vld [vmem:[#allocation6 + $0x3f0] sm:$0xff]
    %v268 = vld [vmem:[#allocation6 + $0x3f8] sm:$0xff]
    %v269 = vld [vmem:[#allocation6 + $0x400] sm:$0xff]
    %v270 = vld [vmem:[#allocation6 + $0x408] sm:$0xff]
    %v271 = vld [vmem:[#allocation6 + $0x410] sm:$0xff]
    %v272 = vld [vmem:[#allocation6 + $0x418] sm:$0xff]
    %v273 = vld [vmem:[#allocation6 + $0x420] sm:$0xff]
    %v274 = vld [vmem:[#allocation6 + $0x428] sm:$0xff]
    %v275 = vld [vmem:[#allocation6 + $0x430] sm:$0xff]
    %v276 = vld [vmem:[#allocation6 + $0x438] sm:$0xff]
    %v277 = vld [vmem:[#allocation6 + $0x440] sm:$0xff]
    %v278 = vld [vmem:[#allocation6 + $0x448] sm:$0xff]
    %v279 = vld [vmem:[#allocation6 + $0x450] sm:$0xff]
    %v280 = vld [vmem:[#allocation6 + $0x458] sm:$0xff]
    %v281 = vld [vmem:[#allocation6 + $0x460] sm:$0xff]
    %v282 = vld [vmem:[#allocation6 + $0x468] sm:$0xff]
    %v283 = vld [vmem:[#allocation6 + $0x470] sm:$0xff]
    %v284 = vld [vmem:[#allocation6 + $0x478] sm:$0xff]
    %v285 = vld [vmem:[#allocation6 + $0x480] sm:$0xff]
    %v286 = vld [vmem:[#allocation6 + $0x488] sm:$0xff]
    %v287 = vld [vmem:[#allocation6 + $0x490] sm:$0xff]
    %v288 = vld [vmem:[#allocation6 + $0x498] sm:$0xff]
    %v289 = vld [vmem:[#allocation6 + $0x4a0] sm:$0xff]
    %v290 = vld [vmem:[#allocation6 + $0x4a8] sm:$0xff]
    %v291 = vld [vmem:[#allocation6 + $0x4b0] sm:$0xff]
    %v292 = vld [vmem:[#allocation6 + $0x4b8] sm:$0xff]
    %v293 = vld [vmem:[#allocation6 + $0x4c0] sm:$0xff]
    %v294 = vld [vmem:[#allocation6 + $0x4c8] sm:$0xff]
    %v295 = vld [vmem:[#allocation6 + $0x4d0] sm:$0xff]
    %v296 = vld [vmem:[#allocation6 + $0x4d8] sm:$0xff]
    %v297 = vld [vmem:[#allocation6 + $0x4e0] sm:$0xff]
    %v298 = vld [vmem:[#allocation6 + $0x4e8] sm:$0xff]
    %v299 = vld [vmem:[#allocation6 + $0x4f0] sm:$0xff]
    %v300 = vld [vmem:[#allocation6 + $0x4f8] sm:$0xff]
    %v301 = vld [vmem:[#allocation6 + $0x500] sm:$0xff]
    %v302 = vld [vmem:[#allocation6 + $0x508] sm:$0xff]
    %v303 = vld [vmem:[#allocation6 + $0x510] sm:$0xff]
    %v304 = vld [vmem:[#allocation6 + $0x518] sm:$0xff]
    %v305 = vld [vmem:[#allocation6 + $0x520] sm:$0xff]
    %v306 = vld [vmem:[#allocation6 + $0x528] sm:$0xff]
    %v307 = vld [vmem:[#allocation6 + $0x530] sm:$0xff]
    %v308 = vld [vmem:[#allocation6 + $0x538] sm:$0xff]
    %v309 = vld [vmem:[#allocation6 + $0x540] sm:$0xff]
    %v310 = vld [vmem:[#allocation6 + $0x548] sm:$0xff]
    %v311 = vld [vmem:[#allocation6 + $0x550] sm:$0xff]
    %v312 = vld [vmem:[#allocation6 + $0x558] sm:$0xff]
    %v313 = vld [vmem:[#allocation6 + $0x560] sm:$0xff]
    %v314 = vld [vmem:[#allocation6 + $0x568] sm:$0xff]
    %v315 = vld [vmem:[#allocation6 + $0x570] sm:$0xff]
    %v316 = vld [vmem:[#allocation6 + $0x578] sm:$0xff]
    %v317 = vld [vmem:[#allocation6 + $0x580] sm:$0xff]
    %v318 = vld [vmem:[#allocation6 + $0x588] sm:$0xff]
    %v319 = vld [vmem:[#allocation6 + $0x590] sm:$0xff]
    %v320 = vld [vmem:[#allocation6 + $0x598] sm:$0xff]
    %v321 = vld [vmem:[#allocation6 + $0x5a0] sm:$0xff]
    %v322 = vld [vmem:[#allocation6 + $0x5a8] sm:$0xff]
    %v323 = vld [vmem:[#allocation6 + $0x5b0] sm:$0xff]
    %v324 = vld [vmem:[#allocation6 + $0x5b8] sm:$0xff]
    %v325 = vld [vmem:[#allocation6 + $0x5c0] sm:$0xff]
    %v326 = vld [vmem:[#allocation6 + $0x5c8] sm:$0xff]
    %v327 = vld [vmem:[#allocation6 + $0x5d0] sm:$0xff]
    %v328 = vld [vmem:[#allocation6 + $0x5d8] sm:$0xff]
    %v329 = vld [vmem:[#allocation6 + $0x5e0] sm:$0xff]
    %v330 = vld [vmem:[#allocation6 + $0x5e8] sm:$0xff]
    %v331 = vld [vmem:[#allocation6 + $0x5f0] sm:$0xff]
    %v332 = vld [vmem:[#allocation6 + $0x5f8] sm:$0xff]
    %v333 = vld [vmem:[#allocation6 + $0x600] sm:$0xff]
    %v334 = vld [vmem:[#allocation6 + $0x608] sm:$0xff]
    %v335 = vld [vmem:[#allocation6 + $0x610] sm:$0xff]
    %v336 = vld [vmem:[#allocation6 + $0x618] sm:$0xff]
    %v337 = vld [vmem:[#allocation6 + $0x620] sm:$0xff]
    %v338 = vld [vmem:[#allocation6 + $0x628] sm:$0xff]
    %v339 = vld [vmem:[#allocation6 + $0x630] sm:$0xff]
    %v340 = vld [vmem:[#allocation6 + $0x638] sm:$0xff]
    %v341 = vld [vmem:[#allocation6 + $0x640] sm:$0xff]
    %v342 = vld [vmem:[#allocation6 + $0x648] sm:$0xff]
    %v343 = vld [vmem:[#allocation6 + $0x650] sm:$0xff]
    %v344 = vld [vmem:[#allocation6 + $0x658] sm:$0xff]
    %v345 = vld [vmem:[#allocation6 + $0x660] sm:$0xff]
    %v346 = vld [vmem:[#allocation6 + $0x668] sm:$0xff]
    %v347 = vld [vmem:[#allocation6 + $0x670] sm:$0xff]
    %v348 = vld [vmem:[#allocation6 + $0x678] sm:$0xff]
    %v349 = vld [vmem:[#allocation6 + $0x680] sm:$0xff]
    %v350 = vld [vmem:[#allocation6 + $0x688] sm:$0xff]
    %v351 = vld [vmem:[#allocation6 + $0x690] sm:$0xff]
    %v352 = vld [vmem:[#allocation6 + $0x698] sm:$0xff]
    %v353 = vld [vmem:[#allocation6 + $0x6a0] sm:$0xff]
    %v354 = vld [vmem:[#allocation6 + $0x6a8] sm:$0xff]
    %v355 = vld [vmem:[#allocation6 + $0x6b0] sm:$0xff]
    %v356 = vld [vmem:[#allocation6 + $0x6b8] sm:$0xff]
    %v357 = vld [vmem:[#allocation6 + $0x6c0] sm:$0xff]
    %v358 = vld [vmem:[#allocation6 + $0x6c8] sm:$0xff]
    %v359 = vld [vmem:[#allocation6 + $0x6d0] sm:$0xff]
    %v360 = vld [vmem:[#allocation6 + $0x6d8] sm:$0xff]
    %v361 = vld [vmem:[#allocation6 + $0x6e0] sm:$0xff]
    %v362 = vld [vmem:[#allocation6 + $0x6e8] sm:$0xff]
    %v363 = vld [vmem:[#allocation6 + $0x6f0] sm:$0xff]
    %v364 = vld [vmem:[#allocation6 + $0x6f8] sm:$0xff]
    %v365 = vld [vmem:[#allocation6 + $0x700] sm:$0xff]
    %v366 = vld [vmem:[#allocation6 + $0x708] sm:$0xff]
    %v367 = vld [vmem:[#allocation6 + $0x710] sm:$0xff]
    %v368 = vld [vmem:[#allocation6 + $0x718] sm:$0xff]
    %v369 = vld [vmem:[#allocation6 + $0x720] sm:$0xff]
    %v370 = vld [vmem:[#allocation6 + $0x728] sm:$0xff]
    %v371 = vld [vmem:[#allocation6 + $0x730] sm:$0xff]
    %v372 = vld [vmem:[#allocation6 + $0x738] sm:$0xff]
    %v373 = vld [vmem:[#allocation6 + $0x740] sm:$0xff]
    %v374 = vld [vmem:[#allocation6 + $0x748] sm:$0xff]
    %v375 = vld [vmem:[#allocation6 + $0x750] sm:$0xff]
    %v376 = vld [vmem:[#allocation6 + $0x758] sm:$0xff]
    %v377 = vld [vmem:[#allocation6 + $0x760] sm:$0xff]
    %v378 = vld [vmem:[#allocation6 + $0x768] sm:$0xff]
    %v379 = vld [vmem:[#allocation6 + $0x770] sm:$0xff]
    %v380 = vld [vmem:[#allocation6 + $0x778] sm:$0xff]
    %v381 = vld [vmem:[#allocation6 + $0x780] sm:$0xff]
    %v382 = vld [vmem:[#allocation6 + $0x788] sm:$0xff]
    %v383 = vld [vmem:[#allocation6 + $0x790] sm:$0xff]
    %v384 = vld [vmem:[#allocation6 + $0x798] sm:$0xff]
    %v385 = vld [vmem:[#allocation6 + $0x7a0] sm:$0xff]
    %v386 = vld [vmem:[#allocation6 + $0x7a8] sm:$0xff]
    %v387 = vld [vmem:[#allocation6 + $0x7b0] sm:$0xff]
    %v388 = vld [vmem:[#allocation6 + $0x7b8] sm:$0xff]
    %v389 = vld [vmem:[#allocation6 + $0x7c0] sm:$0xff]
    %v390 = vld [vmem:[#allocation6 + $0x7c8] sm:$0xff]
    %v391 = vld [vmem:[#allocation6 + $0x7d0] sm:$0xff]
    %v392 = vld [vmem:[#allocation6 + $0x7d8] sm:$0xff]
    %v393 = vld [vmem:[#allocation6 + $0x7e0] sm:$0xff]
    %v394 = vld [vmem:[#allocation6 + $0x7e8] sm:$0xff]
    %v395 = vld [vmem:[#allocation6 + $0x7f0] sm:$0xff]
    %v396 = vld [vmem:[#allocation6 + $0x7f8] sm:$0xff]
    %v397 = vld [vmem:[#allocation6 + $0x800] sm:$0xff]
    %v398 = vld [vmem:[#allocation6 + $0x808] sm:$0xff]
    %v399 = vld [vmem:[#allocation6 + $0x810] sm:$0xff]
    %v400 = vld [vmem:[#allocation6 + $0x818] sm:$0xff]
    %v401 = vld [vmem:[#allocation6 + $0x820] sm:$0xff]
    %v402 = vld [vmem:[#allocation6 + $0x828] sm:$0xff]
    %v403 = vld [vmem:[#allocation6 + $0x830] sm:$0xff]
    %v404 = vld [vmem:[#allocation6 + $0x838] sm:$0xff]
    %v405 = vld [vmem:[#allocation6 + $0x840] sm:$0xff]
    %v406 = vld [vmem:[#allocation6 + $0x848] sm:$0xff]
    %v407 = vld [vmem:[#allocation6 + $0x850] sm:$0xff]
    %v408 = vld [vmem:[#allocation6 + $0x858] sm:$0xff]
    %v409 = vld [vmem:[#allocation6 + $0x860] sm:$0xff]
    %v410 = vld [vmem:[#allocation6 + $0x868] sm:$0xff]
    %v411 = vld [vmem:[#allocation6 + $0x870] sm:$0xff]
    %v412 = vld [vmem:[#allocation6 + $0x878] sm:$0xff]
    %v413 = vld [vmem:[#allocation6 + $0x880] sm:$0xff]
    %v414 = vld [vmem:[#allocation6 + $0x888] sm:$0xff]
    %v415 = vld [vmem:[#allocation6 + $0x890] sm:$0xff]
    %v416 = vld [vmem:[#allocation6 + $0x898] sm:$0xff]
    %v417 = vld [vmem:[#allocation6 + $0x8a0] sm:$0xff]
    %v418 = vld [vmem:[#allocation6 + $0x8a8] sm:$0xff]
    %v419 = vld [vmem:[#allocation6 + $0x8b0] sm:$0xff]
    %v420 = vld [vmem:[#allocation6 + $0x8b8] sm:$0xff]
    %v421 = vld [vmem:[#allocation6 + $0x8c0] sm:$0xff]
    %v422 = vld [vmem:[#allocation6 + $0x8c8] sm:$0xff]
    %v423 = vld [vmem:[#allocation6 + $0x8d0] sm:$0xff]
    %v424 = vld [vmem:[#allocation6 + $0x8d8] sm:$0xff]
    %v425 = vld [vmem:[#allocation6 + $0x8e0] sm:$0xff]
    %v426 = vld [vmem:[#allocation6 + $0x8e8] sm:$0xff]
    %v427 = vld [vmem:[#allocation6 + $0x8f0] sm:$0xff]
    %v428 = vld [vmem:[#allocation6 + $0x8f8] sm:$0xff]
    %v429 = vld [vmem:[#allocation6 + $0x900] sm:$0xff]
    %v430 = vld [vmem:[#allocation6 + $0x908] sm:$0xff]
    %v431 = vld [vmem:[#allocation6 + $0x910] sm:$0xff]
    %v432 = vld [vmem:[#allocation6 + $0x918] sm:$0xff]
    %v433 = vld [vmem:[#allocation6 + $0x920] sm:$0xff]
    %v434 = vld [vmem:[#allocation6 + $0x928] sm:$0xff]
    %v435 = vld [vmem:[#allocation6 + $0x930] sm:$0xff]
    %v436 = vld [vmem:[#allocation6 + $0x938] sm:$0xff]
    %v437 = vld [vmem:[#allocation6 + $0x940] sm:$0xff]
    %v438 = vld [vmem:[#allocation6 + $0x948] sm:$0xff]
    %v439 = vld [vmem:[#allocation6 + $0x950] sm:$0xff]
    %v440 = vld [vmem:[#allocation6 + $0x958] sm:$0xff]
    %v441 = vld [vmem:[#allocation6 + $0x960] sm:$0xff]
    %v442 = vld [vmem:[#allocation6 + $0x968] sm:$0xff]
    %v443 = vld [vmem:[#allocation6 + $0x970] sm:$0xff]
    %v444 = vld [vmem:[#allocation6 + $0x978] sm:$0xff]
    %v445 = vld [vmem:[#allocation6 + $0x980] sm:$0xff]
    %v446 = vld [vmem:[#allocation6 + $0x988] sm:$0xff]
    %v447 = vld [vmem:[#allocation6 + $0x990] sm:$0xff]
    %v448 = vld [vmem:[#allocation6 + $0x998] sm:$0xff]
    %v449 = vld [vmem:[#allocation6 + $0x9a0] sm:$0xff]
    %v450 = vld [vmem:[#allocation6 + $0x9a8] sm:$0xff]
    %v451 = vld [vmem:[#allocation6 + $0x9b0] sm:$0xff]
    %v452 = vld [vmem:[#allocation6 + $0x9b8] sm:$0xff]
    %v453 = vld [vmem:[#allocation6 + $0x9c0] sm:$0xff]
    %v454 = vld [vmem:[#allocation6 + $0x9c8] sm:$0xff]
    %v455 = vld [vmem:[#allocation6 + $0x9d0] sm:$0xff]
    %v456 = vld [vmem:[#allocation6 + $0x9d8] sm:$0xff]
    %v457 = vld [vmem:[#allocation6 + $0x9e0] sm:$0xff]
    %v458 = vld [vmem:[#allocation6 + $0x9e8] sm:$0xff]
    %v459 = vld [vmem:[#allocation6 + $0x9f0] sm:$0xff]
    %v460 = vld [vmem:[#allocation6 + $0x9f8] sm:$0xff]
    %v461 = vld [vmem:[#allocation6 + $0xa00] sm:$0xff]
    %v462 = vld [vmem:[#allocation6 + $0xa08] sm:$0xff]
    %v463 = vld [vmem:[#allocation6 + $0xa10] sm:$0xff]
    %v464 = vld [vmem:[#allocation6 + $0xa18] sm:$0xff]
    %v465 = vld [vmem:[#allocation6 + $0xa20] sm:$0xff]
    %v466 = vld [vmem:[#allocation6 + $0xa28] sm:$0xff]
    %v467 = vld [vmem:[#allocation6 + $0xa30] sm:$0xff]
    %v468 = vld [vmem:[#allocation6 + $0xa38] sm:$0xff]
    %v469 = vld [vmem:[#allocation6 + $0xa40] sm:$0xff]
    %v470 = vld [vmem:[#allocation6 + $0xa48] sm:$0xff]
    %v471 = vld [vmem:[#allocation6 + $0xa50] sm:$0xff]
    %v472 = vld [vmem:[#allocation6 + $0xa58] sm:$0xff]
    %v473 = vld [vmem:[#allocation6 + $0xa60] sm:$0xff]
    %v474 = vld [vmem:[#allocation6 + $0xa68] sm:$0xff]
    %v475 = vld [vmem:[#allocation6 + $0xa70] sm:$0xff]
    %v476 = vld [vmem:[#allocation6 + $0xa78] sm:$0xff]
    %v477 = vld [vmem:[#allocation6 + $0xa80] sm:$0xff]
    %v478 = vld [vmem:[#allocation6 + $0xa88] sm:$0xff]
    %v479 = vld [vmem:[#allocation6 + $0xa90] sm:$0xff]
    %v480 = vld [vmem:[#allocation6 + $0xa98] sm:$0xff]
    %v481 = vld [vmem:[#allocation6 + $0xaa0] sm:$0xff]
    %v482 = vld [vmem:[#allocation6 + $0xaa8] sm:$0xff]
    %v483 = vld [vmem:[#allocation6 + $0xab0] sm:$0xff]
    %v484 = vld [vmem:[#allocation6 + $0xab8] sm:$0xff]
    %v485 = vld [vmem:[#allocation6 + $0xac0] sm:$0xff]
    %v486 = vld [vmem:[#allocation6 + $0xac8] sm:$0xff]
    %v487 = vld [vmem:[#allocation6 + $0xad0] sm:$0xff]
    %v488 = vld [vmem:[#allocation6 + $0xad8] sm:$0xff]
    %v489 = vld [vmem:[#allocation6 + $0xae0] sm:$0xff]
    %v490 = vld [vmem:[#allocation6 + $0xae8] sm:$0xff]
    %v491 = vld [vmem:[#allocation6 + $0xaf0] sm:$0xff]
    %v492 = vld [vmem:[#allocation6 + $0xaf8] sm:$0xff]
    %v493 = vld [vmem:[#allocation6 + $0xb00] sm:$0xff]
    %v494 = vld [vmem:[#allocation6 + $0xb08] sm:$0xff]
    %v495 = vld [vmem:[#allocation6 + $0xb10] sm:$0xff]
    %v496 = vld [vmem:[#allocation6 + $0xb18] sm:$0xff]
    %v497 = vld [vmem:[#allocation6 + $0xb20] sm:$0xff]
    %v498 = vld [vmem:[#allocation6 + $0xb28] sm:$0xff]
    %v499 = vld [vmem:[#allocation6 + $0xb30] sm:$0xff]
    %v500 = vld [vmem:[#allocation6 + $0xb38] sm:$0xff]
    %v501 = vld [vmem:[#allocation6 + $0xb40] sm:$0xff]
    %v502 = vld [vmem:[#allocation6 + $0xb48] sm:$0xff]
    %v503 = vld [vmem:[#allocation6 + $0xb50] sm:$0xff]
    %v504 = vld [vmem:[#allocation6 + $0xb58] sm:$0xff]
    %v505 = vld [vmem:[#allocation6 + $0xb60] sm:$0xff]
    %v506 = vld [vmem:[#allocation6 + $0xb68] sm:$0xff]
    %v507 = vld [vmem:[#allocation6 + $0xb70] sm:$0xff]
    %v508 = vld [vmem:[#allocation6 + $0xb78] sm:$0xff]
    %v509 = vld [vmem:[#allocation6 + $0xb80] sm:$0xff]
    %v510 = vld [vmem:[#allocation6 + $0xb88] sm:$0xff]
    %v511 = vld [vmem:[#allocation6 + $0xb90] sm:$0xff]
    %v512 = vld [vmem:[#allocation6 + $0xb98] sm:$0xff]
    %v513 = vld [vmem:[#allocation6 + $0xba0] sm:$0xff]
    %v514 = vld [vmem:[#allocation6 + $0xba8] sm:$0xff]
    %v515 = vld [vmem:[#allocation6 + $0xbb0] sm:$0xff]
    %v516 = vld [vmem:[#allocation6 + $0xbb8] sm:$0xff]
    %v517 = vld [vmem:[#allocation6 + $0xbc0] sm:$0xff]
    %v518 = vld [vmem:[#allocation6 + $0xbc8] sm:$0xff]
    %v519 = vld [vmem:[#allocation6 + $0xbd0] sm:$0xff]
    %v520 = vld [vmem:[#allocation6 + $0xbd8] sm:$0xff]
    %v521 = vld [vmem:[#allocation6 + $0xbe0] sm:$0xff]
    %v522 = vld [vmem:[#allocation6 + $0xbe8] sm:$0xff]
    %v523 = vld [vmem:[#allocation6 + $0xbf0] sm:$0xff]
    %v524 = vld [vmem:[#allocation6 + $0xbf8] sm:$0xff]
    %v525 = vld [vmem:[#allocation8] sm:$0xf]
    %v527 = vlaneseq
    %v528 = vshrl.u32 %v527, 7
    %v529 = vsub.s32 0, %v528
    %v530 = vrot.slane %v525, %v529
    %v531 = vlaneseq
    %v532 = vshrl.u32 %v531, 7
    %v533 = vsub.s32 1, %v532
    %v534 = vrot.slane %v525, %v533
    %v535 = vlaneseq
    %v536 = vshrl.u32 %v535, 7
    %v537 = vsub.s32 2, %v536
    %v538 = vrot.slane %v525, %v537
    %v539 = vlaneseq
    %v540 = vshrl.u32 %v539, 7
    %v541 = vsub.s32 3, %v540
    %v542 = vrot.slane %v525, %v541
    %v931 = vunpack.c.l.b16 %v141
    %v932 = vunpack.c.h.b16 %v141
    %v933 = vunpack.c.l.b16 %v142
    %v934 = vunpack.c.h.b16 %v142
    %v935 = vunpack.c.l.b16 %v143
    %v936 = vunpack.c.h.b16 %v143
    %v937 = vunpack.c.l.b16 %v144
    %v938 = vunpack.c.h.b16 %v144
    %v939 = vunpack.c.l.b16 %v145
    %v940 = vunpack.c.h.b16 %v145
    %v941 = vunpack.c.l.b16 %v146
    %v942 = vunpack.c.h.b16 %v146
    %v943 = vunpack.c.l.b16 %v147
    %v944 = vunpack.c.h.b16 %v147
    %v945 = vunpack.c.l.b16 %v148
    %v946 = vunpack.c.h.b16 %v148
    %v947 = vunpack.c.l.b16 %v149
    %v948 = vunpack.c.h.b16 %v149
    %v949 = vunpack.c.l.b16 %v150
    %v950 = vunpack.c.h.b16 %v150
    %v951 = vunpack.c.l.b16 %v151
    %v952 = vunpack.c.h.b16 %v151
    %v953 = vunpack.c.l.b16 %v152
    %v954 = vunpack.c.h.b16 %v152
    %v955 = vunpack.c.l.b16 %v153
    %v956 = vunpack.c.h.b16 %v153
    %v957 = vunpack.c.l.b16 %v154
    %v958 = vunpack.c.h.b16 %v154
    %v959 = vunpack.c.l.b16 %v155
    %v960 = vunpack.c.h.b16 %v155
    %v961 = vunpack.c.l.b16 %v156
    %v962 = vunpack.c.h.b16 %v156
    %v963 = vunpack.c.l.b16 %v157
    %v964 = vunpack.c.h.b16 %v157
    %v965 = vunpack.c.l.b16 %v158
    %v966 = vunpack.c.h.b16 %v158
    %v967 = vunpack.c.l.b16 %v159
    %v968 = vunpack.c.h.b16 %v159
    %v969 = vunpack.c.l.b16 %v160
    %v970 = vunpack.c.h.b16 %v160
    %v971 = vunpack.c.l.b16 %v161
    %v972 = vunpack.c.h.b16 %v161
    %v973 = vunpack.c.l.b16 %v162
    %v974 = vunpack.c.h.b16 %v162
    %v975 = vunpack.c.l.b16 %v163
    %v976 = vunpack.c.h.b16 %v163
    %v977 = vunpack.c.l.b16 %v164
    %v978 = vunpack.c.h.b16 %v164
    %v979 = vunpack.c.l.b16 %v165
    %v980 = vunpack.c.h.b16 %v165
    %v981 = vunpack.c.l.b16 %v166
    %v982 = vunpack.c.h.b16 %v166
    %v983 = vunpack.c.l.b16 %v167
    %v984 = vunpack.c.h.b16 %v167
    %v985 = vunpack.c.l.b16 %v168
    %v986 = vunpack.c.h.b16 %v168
    %v987 = vunpack.c.l.b16 %v169
    %v988 = vunpack.c.h.b16 %v169
    %v989 = vunpack.c.l.b16 %v170
    %v990 = vunpack.c.h.b16 %v170
    %v991 = vunpack.c.l.b16 %v171
    %v992 = vunpack.c.h.b16 %v171
    %v993 = vunpack.c.l.b16 %v172
    %v994 = vunpack.c.h.b16 %v172
    %v995 = vunpack.c.l.b16 %v173
    %v996 = vunpack.c.h.b16 %v173
    %v997 = vunpack.c.l.b16 %v174
    %v998 = vunpack.c.h.b16 %v174
    %v999 = vunpack.c.l.b16 %v175
    %v1000 = vunpack.c.h.b16 %v175
    %v1001 = vunpack.c.l.b16 %v176
    %v1002 = vunpack.c.h.b16 %v176
    %v1003 = vunpack.c.l.b16 %v177
    %v1004 = vunpack.c.h.b16 %v177
    %v1005 = vunpack.c.l.b16 %v178
    %v1006 = vunpack.c.h.b16 %v178
    %v1007 = vunpack.c.l.b16 %v179
    %v1008 = vunpack.c.h.b16 %v179
    %v1009 = vunpack.c.l.b16 %v180
    %v1010 = vunpack.c.h.b16 %v180
    %v1011 = vunpack.c.l.b16 %v181
    %v1012 = vunpack.c.h.b16 %v181
    %v1013 = vunpack.c.l.b16 %v182
    %v1014 = vunpack.c.h.b16 %v182
    %v1015 = vunpack.c.l.b16 %v183
    %v1016 = vunpack.c.h.b16 %v183
    %v1017 = vunpack.c.l.b16 %v184
    %v1018 = vunpack.c.h.b16 %v184
    %v1019 = vunpack.c.l.b16 %v185
    %v1020 = vunpack.c.h.b16 %v185
    %v1021 = vunpack.c.l.b16 %v186
    %v1022 = vunpack.c.h.b16 %v186
    %v1023 = vunpack.c.l.b16 %v187
    %v1024 = vunpack.c.h.b16 %v187
    %v1025 = vunpack.c.l.b16 %v188
    %v1026 = vunpack.c.h.b16 %v188
    %v1027 = vunpack.c.l.b16 %v189
    %v1028 = vunpack.c.h.b16 %v189
    %v1029 = vunpack.c.l.b16 %v190
    %v1030 = vunpack.c.h.b16 %v190
    %v1031 = vunpack.c.l.b16 %v191
    %v1032 = vunpack.c.h.b16 %v191
    %v1033 = vunpack.c.l.b16 %v192
    %v1034 = vunpack.c.h.b16 %v192
    %v1035 = vunpack.c.l.b16 %v193
    %v1036 = vunpack.c.h.b16 %v193
    %v1037 = vunpack.c.l.b16 %v194
    %v1038 = vunpack.c.h.b16 %v194
    %v1039 = vunpack.c.l.b16 %v195
    %v1040 = vunpack.c.h.b16 %v195
    %v1041 = vunpack.c.l.b16 %v196
    %v1042 = vunpack.c.h.b16 %v196
    %v1043 = vunpack.c.l.b16 %v197
    %v1044 = vunpack.c.h.b16 %v197
    %v1045 = vunpack.c.l.b16 %v198
    %v1046 = vunpack.c.h.b16 %v198
    %v1047 = vunpack.c.l.b16 %v199
    %v1048 = vunpack.c.h.b16 %v199
    %v1049 = vunpack.c.l.b16 %v200
    %v1050 = vunpack.c.h.b16 %v200
    %v1051 = vunpack.c.l.b16 %v201
    %v1052 = vunpack.c.h.b16 %v201
    %v1053 = vunpack.c.l.b16 %v202
    %v1054 = vunpack.c.h.b16 %v202
    %v1055 = vunpack.c.l.b16 %v203
    %v1056 = vunpack.c.h.b16 %v203
    %v1057 = vunpack.c.l.b16 %v204
    %v1058 = vunpack.c.h.b16 %v204
    %v1059 = vunpack.c.l.b16 %v205
    %v1060 = vunpack.c.h.b16 %v205
    %v1061 = vunpack.c.l.b16 %v206
    %v1062 = vunpack.c.h.b16 %v206
    %v1063 = vunpack.c.l.b16 %v207
    %v1064 = vunpack.c.h.b16 %v207
    %v1065 = vunpack.c.l.b16 %v208
    %v1066 = vunpack.c.h.b16 %v208
    %v1067 = vunpack.c.l.b16 %v209
    %v1068 = vunpack.c.h.b16 %v209
    %v1069 = vunpack.c.l.b16 %v210
    %v1070 = vunpack.c.h.b16 %v210
    %v1071 = vunpack.c.l.b16 %v211
    %v1072 = vunpack.c.h.b16 %v211
    %v1073 = vunpack.c.l.b16 %v212
    %v1074 = vunpack.c.h.b16 %v212
    %v1075 = vunpack.c.l.b16 %v213
    %v1076 = vunpack.c.h.b16 %v213
    %v1077 = vunpack.c.l.b16 %v214
    %v1078 = vunpack.c.h.b16 %v214
    %v1079 = vunpack.c.l.b16 %v215
    %v1080 = vunpack.c.h.b16 %v215
    %v1081 = vunpack.c.l.b16 %v216
    %v1082 = vunpack.c.h.b16 %v216
    %v1083 = vunpack.c.l.b16 %v217
    %v1084 = vunpack.c.h.b16 %v217
    %v1085 = vunpack.c.l.b16 %v218
    %v1086 = vunpack.c.h.b16 %v218
    %v1087 = vunpack.c.l.b16 %v219
    %v1088 = vunpack.c.h.b16 %v219
    %v1089 = vunpack.c.l.b16 %v220
    %v1090 = vunpack.c.h.b16 %v220
    %v1091 = vunpack.c.l.b16 %v221
    %v1092 = vunpack.c.h.b16 %v221
    %v1093 = vunpack.c.l.b16 %v222
    %v1094 = vunpack.c.h.b16 %v222
    %v1095 = vunpack.c.l.b16 %v223
    %v1096 = vunpack.c.h.b16 %v223
    %v1097 = vunpack.c.l.b16 %v224
    %v1098 = vunpack.c.h.b16 %v224
    %v1099 = vunpack.c.l.b16 %v225
    %v1100 = vunpack.c.h.b16 %v225
    %v1101 = vunpack.c.l.b16 %v226
    %v1102 = vunpack.c.h.b16 %v226
    %v1103 = vunpack.c.l.b16 %v227
    %v1104 = vunpack.c.h.b16 %v227
    %v1105 = vunpack.c.l.b16 %v228
    %v1106 = vunpack.c.h.b16 %v228
    %v1107 = vunpack.c.l.b16 %v229
    %v1108 = vunpack.c.h.b16 %v229
    %v1109 = vunpack.c.l.b16 %v230
    %v1110 = vunpack.c.h.b16 %v230
    %v1111 = vunpack.c.l.b16 %v231
    %v1112 = vunpack.c.h.b16 %v231
    %v1113 = vunpack.c.l.b16 %v232
    %v1114 = vunpack.c.h.b16 %v232
    %v1115 = vunpack.c.l.b16 %v233
    %v1116 = vunpack.c.h.b16 %v233
    %v1117 = vunpack.c.l.b16 %v234
    %v1118 = vunpack.c.h.b16 %v234
    %v1119 = vunpack.c.l.b16 %v235
    %v1120 = vunpack.c.h.b16 %v235
    %v1121 = vunpack.c.l.b16 %v236
    %v1122 = vunpack.c.h.b16 %v236
    %v1123 = vunpack.c.l.b16 %v237
    %v1124 = vunpack.c.h.b16 %v237
    %v1125 = vunpack.c.l.b16 %v238
    %v1126 = vunpack.c.h.b16 %v238
    %v1127 = vunpack.c.l.b16 %v239
    %v1128 = vunpack.c.h.b16 %v239
    %v1129 = vunpack.c.l.b16 %v240
    %v1130 = vunpack.c.h.b16 %v240
    %v1131 = vunpack.c.l.b16 %v241
    %v1132 = vunpack.c.h.b16 %v241
    %v1133 = vunpack.c.l.b16 %v242
    %v1134 = vunpack.c.h.b16 %v242
    %v1135 = vunpack.c.l.b16 %v243
    %v1136 = vunpack.c.h.b16 %v243
    %v1137 = vunpack.c.l.b16 %v244
    %v1138 = vunpack.c.h.b16 %v244
    %v1139 = vunpack.c.l.b16 %v245
    %v1140 = vunpack.c.h.b16 %v245
    %v1141 = vunpack.c.l.b16 %v246
    %v1142 = vunpack.c.h.b16 %v246
    %v1143 = vunpack.c.l.b16 %v247
    %v1144 = vunpack.c.h.b16 %v247
    %v1145 = vunpack.c.l.b16 %v248
    %v1146 = vunpack.c.h.b16 %v248
    %v1147 = vunpack.c.l.b16 %v249
    %v1148 = vunpack.c.h.b16 %v249
    %v1149 = vunpack.c.l.b16 %v250
    %v1150 = vunpack.c.h.b16 %v250
    %v1151 = vunpack.c.l.b16 %v251
    %v1152 = vunpack.c.h.b16 %v251
    %v1153 = vunpack.c.l.b16 %v252
    %v1154 = vunpack.c.h.b16 %v252
    %v1155 = vunpack.c.l.b16 %v253
    %v1156 = vunpack.c.h.b16 %v253
    %v1157 = vunpack.c.l.b16 %v254
    %v1158 = vunpack.c.h.b16 %v254
    %v1159 = vunpack.c.l.b16 %v255
    %v1160 = vunpack.c.h.b16 %v255
    %v1161 = vunpack.c.l.b16 %v256
    %v1162 = vunpack.c.h.b16 %v256
    %v1163 = vunpack.c.l.b16 %v257
    %v1164 = vunpack.c.h.b16 %v257
    %v1165 = vunpack.c.l.b16 %v258
    %v1166 = vunpack.c.h.b16 %v258
    %v1167 = vunpack.c.l.b16 %v259
    %v1168 = vunpack.c.h.b16 %v259
    %v1169 = vunpack.c.l.b16 %v260
    %v1170 = vunpack.c.h.b16 %v260
    %v1171 = vunpack.c.l.b16 %v261
    %v1172 = vunpack.c.h.b16 %v261
    %v1173 = vunpack.c.l.b16 %v262
    %v1174 = vunpack.c.h.b16 %v262
    %v1175 = vunpack.c.l.b16 %v263
    %v1176 = vunpack.c.h.b16 %v263
    %v1177 = vunpack.c.l.b16 %v264
    %v1178 = vunpack.c.h.b16 %v264
    %v1179 = vunpack.c.l.b16 %v265
    %v1180 = vunpack.c.h.b16 %v265
    %v1181 = vunpack.c.l.b16 %v266
    %v1182 = vunpack.c.h.b16 %v266
    %v1183 = vunpack.c.l.b16 %v267
    %v1184 = vunpack.c.h.b16 %v267
    %v1185 = vunpack.c.l.b16 %v268
    %v1186 = vunpack.c.h.b16 %v268
    %v1187 = vunpack.c.l.b16 %v269
    %v1188 = vunpack.c.h.b16 %v269
    %v1189 = vunpack.c.l.b16 %v270
    %v1190 = vunpack.c.h.b16 %v270
    %v1191 = vunpack.c.l.b16 %v271
    %v1192 = vunpack.c.h.b16 %v271
    %v1193 = vunpack.c.l.b16 %v272
    %v1194 = vunpack.c.h.b16 %v272
    %v1195 = vunpack.c.l.b16 %v273
    %v1196 = vunpack.c.h.b16 %v273
    %v1197 = vunpack.c.l.b16 %v274
    %v1198 = vunpack.c.h.b16 %v274
    %v1199 = vunpack.c.l.b16 %v275
    %v1200 = vunpack.c.h.b16 %v275
    %v1201 = vunpack.c.l.b16 %v276
    %v1202 = vunpack.c.h.b16 %v276
    %v1203 = vunpack.c.l.b16 %v277
    %v1204 = vunpack.c.h.b16 %v277
    %v1205 = vunpack.c.l.b16 %v278
    %v1206 = vunpack.c.h.b16 %v278
    %v1207 = vunpack.c.l.b16 %v279
    %v1208 = vunpack.c.h.b16 %v279
    %v1209 = vunpack.c.l.b16 %v280
    %v1210 = vunpack.c.h.b16 %v280
    %v1211 = vunpack.c.l.b16 %v281
    %v1212 = vunpack.c.h.b16 %v281
    %v1213 = vunpack.c.l.b16 %v282
    %v1214 = vunpack.c.h.b16 %v282
    %v1215 = vunpack.c.l.b16 %v283
    %v1216 = vunpack.c.h.b16 %v283
    %v1217 = vunpack.c.l.b16 %v284
    %v1218 = vunpack.c.h.b16 %v284
    %v1219 = vunpack.c.l.b16 %v285
    %v1220 = vunpack.c.h.b16 %v285
    %v1221 = vunpack.c.l.b16 %v286
    %v1222 = vunpack.c.h.b16 %v286
    %v1223 = vunpack.c.l.b16 %v287
    %v1224 = vunpack.c.h.b16 %v287
    %v1225 = vunpack.c.l.b16 %v288
    %v1226 = vunpack.c.h.b16 %v288
    %v1227 = vunpack.c.l.b16 %v289
    %v1228 = vunpack.c.h.b16 %v289
    %v1229 = vunpack.c.l.b16 %v290
    %v1230 = vunpack.c.h.b16 %v290
    %v1231 = vunpack.c.l.b16 %v291
    %v1232 = vunpack.c.h.b16 %v291
    %v1233 = vunpack.c.l.b16 %v292
    %v1234 = vunpack.c.h.b16 %v292
    %v1235 = vunpack.c.l.b16 %v293
    %v1236 = vunpack.c.h.b16 %v293
    %v1237 = vunpack.c.l.b16 %v294
    %v1238 = vunpack.c.h.b16 %v294
    %v1239 = vunpack.c.l.b16 %v295
    %v1240 = vunpack.c.h.b16 %v295
    %v1241 = vunpack.c.l.b16 %v296
    %v1242 = vunpack.c.h.b16 %v296
    %v1243 = vunpack.c.l.b16 %v297
    %v1244 = vunpack.c.h.b16 %v297
    %v1245 = vunpack.c.l.b16 %v298
    %v1246 = vunpack.c.h.b16 %v298
    %v1247 = vunpack.c.l.b16 %v299
    %v1248 = vunpack.c.h.b16 %v299
    %v1249 = vunpack.c.l.b16 %v300
    %v1250 = vunpack.c.h.b16 %v300
    %v1251 = vunpack.c.l.b16 %v301
    %v1252 = vunpack.c.h.b16 %v301
    %v1253 = vunpack.c.l.b16 %v302
    %v1254 = vunpack.c.h.b16 %v302
    %v1255 = vunpack.c.l.b16 %v303
    %v1256 = vunpack.c.h.b16 %v303
    %v1257 = vunpack.c.l.b16 %v304
    %v1258 = vunpack.c.h.b16 %v304
    %v1259 = vunpack.c.l.b16 %v305
    %v1260 = vunpack.c.h.b16 %v305
    %v1261 = vunpack.c.l.b16 %v306
    %v1262 = vunpack.c.h.b16 %v306
    %v1263 = vunpack.c.l.b16 %v307
    %v1264 = vunpack.c.h.b16 %v307
    %v1265 = vunpack.c.l.b16 %v308
    %v1266 = vunpack.c.h.b16 %v308
    %v1267 = vunpack.c.l.b16 %v309
    %v1268 = vunpack.c.h.b16 %v309
    %v1269 = vunpack.c.l.b16 %v310
    %v1270 = vunpack.c.h.b16 %v310
    %v1271 = vunpack.c.l.b16 %v311
    %v1272 = vunpack.c.h.b16 %v311
    %v1273 = vunpack.c.l.b16 %v312
    %v1274 = vunpack.c.h.b16 %v312
    %v1275 = vunpack.c.l.b16 %v313
    %v1276 = vunpack.c.h.b16 %v313
    %v1277 = vunpack.c.l.b16 %v314
    %v1278 = vunpack.c.h.b16 %v314
    %v1279 = vunpack.c.l.b16 %v315
    %v1280 = vunpack.c.h.b16 %v315
    %v1281 = vunpack.c.l.b16 %v316
    %v1282 = vunpack.c.h.b16 %v316
    %v1283 = vunpack.c.l.b16 %v317
    %v1284 = vunpack.c.h.b16 %v317
    %v1285 = vunpack.c.l.b16 %v318
    %v1286 = vunpack.c.h.b16 %v318
    %v1287 = vunpack.c.l.b16 %v319
    %v1288 = vunpack.c.h.b16 %v319
    %v1289 = vunpack.c.l.b16 %v320
    %v1290 = vunpack.c.h.b16 %v320
    %v1291 = vunpack.c.l.b16 %v321
    %v1292 = vunpack.c.h.b16 %v321
    %v1293 = vunpack.c.l.b16 %v322
    %v1294 = vunpack.c.h.b16 %v322
    %v1295 = vunpack.c.l.b16 %v323
    %v1296 = vunpack.c.h.b16 %v323
    %v1297 = vunpack.c.l.b16 %v324
    %v1298 = vunpack.c.h.b16 %v324
    %v1299 = vunpack.c.l.b16 %v325
    %v1300 = vunpack.c.h.b16 %v325
    %v1301 = vunpack.c.l.b16 %v326
    %v1302 = vunpack.c.h.b16 %v326
    %v1303 = vunpack.c.l.b16 %v327
    %v1304 = vunpack.c.h.b16 %v327
    %v1305 = vunpack.c.l.b16 %v328
    %v1306 = vunpack.c.h.b16 %v328
    %v1307 = vunpack.c.l.b16 %v329
    %v1308 = vunpack.c.h.b16 %v329
    %v1309 = vunpack.c.l.b16 %v330
    %v1310 = vunpack.c.h.b16 %v330
    %v1311 = vunpack.c.l.b16 %v331
    %v1312 = vunpack.c.h.b16 %v331
    %v1313 = vunpack.c.l.b16 %v332
    %v1314 = vunpack.c.h.b16 %v332
    %v1315 = vunpack.c.l.b16 %v333
    %v1316 = vunpack.c.h.b16 %v333
    %v1317 = vunpack.c.l.b16 %v334
    %v1318 = vunpack.c.h.b16 %v334
    %v1319 = vunpack.c.l.b16 %v335
    %v1320 = vunpack.c.h.b16 %v335
    %v1321 = vunpack.c.l.b16 %v336
    %v1322 = vunpack.c.h.b16 %v336
    %v1323 = vunpack.c.l.b16 %v337
    %v1324 = vunpack.c.h.b16 %v337
    %v1325 = vunpack.c.l.b16 %v338
    %v1326 = vunpack.c.h.b16 %v338
    %v1327 = vunpack.c.l.b16 %v339
    %v1328 = vunpack.c.h.b16 %v339
    %v1329 = vunpack.c.l.b16 %v340
    %v1330 = vunpack.c.h.b16 %v340
    %v1331 = vunpack.c.l.b16 %v341
    %v1332 = vunpack.c.h.b16 %v341
    %v1333 = vunpack.c.l.b16 %v342
    %v1334 = vunpack.c.h.b16 %v342
    %v1335 = vunpack.c.l.b16 %v343
    %v1336 = vunpack.c.h.b16 %v343
    %v1337 = vunpack.c.l.b16 %v344
    %v1338 = vunpack.c.h.b16 %v344
    %v1339 = vunpack.c.l.b16 %v345
    %v1340 = vunpack.c.h.b16 %v345
    %v1341 = vunpack.c.l.b16 %v346
    %v1342 = vunpack.c.h.b16 %v346
    %v1343 = vunpack.c.l.b16 %v347
    %v1344 = vunpack.c.h.b16 %v347
    %v1345 = vunpack.c.l.b16 %v348
    %v1346 = vunpack.c.h.b16 %v348
    %v1347 = vunpack.c.l.b16 %v349
    %v1348 = vunpack.c.h.b16 %v349
    %v1349 = vunpack.c.l.b16 %v350
    %v1350 = vunpack.c.h.b16 %v350
    %v1351 = vunpack.c.l.b16 %v351
    %v1352 = vunpack.c.h.b16 %v351
    %v1353 = vunpack.c.l.b16 %v352
    %v1354 = vunpack.c.h.b16 %v352
    %v1355 = vunpack.c.l.b16 %v353
    %v1356 = vunpack.c.h.b16 %v353
    %v1357 = vunpack.c.l.b16 %v354
    %v1358 = vunpack.c.h.b16 %v354
    %v1359 = vunpack.c.l.b16 %v355
    %v1360 = vunpack.c.h.b16 %v355
    %v1361 = vunpack.c.l.b16 %v356
    %v1362 = vunpack.c.h.b16 %v356
    %v1363 = vunpack.c.l.b16 %v357
    %v1364 = vunpack.c.h.b16 %v357
    %v1365 = vunpack.c.l.b16 %v358
    %v1366 = vunpack.c.h.b16 %v358
    %v1367 = vunpack.c.l.b16 %v359
    %v1368 = vunpack.c.h.b16 %v359
    %v1369 = vunpack.c.l.b16 %v360
    %v1370 = vunpack.c.h.b16 %v360
    %v1371 = vunpack.c.l.b16 %v361
    %v1372 = vunpack.c.h.b16 %v361
    %v1373 = vunpack.c.l.b16 %v362
    %v1374 = vunpack.c.h.b16 %v362
    %v1375 = vunpack.c.l.b16 %v363
    %v1376 = vunpack.c.h.b16 %v363
    %v1377 = vunpack.c.l.b16 %v364
    %v1378 = vunpack.c.h.b16 %v364
    %v1379 = vunpack.c.l.b16 %v365
    %v1380 = vunpack.c.h.b16 %v365
    %v1381 = vunpack.c.l.b16 %v366
    %v1382 = vunpack.c.h.b16 %v366
    %v1383 = vunpack.c.l.b16 %v367
    %v1384 = vunpack.c.h.b16 %v367
    %v1385 = vunpack.c.l.b16 %v368
    %v1386 = vunpack.c.h.b16 %v368
    %v1387 = vunpack.c.l.b16 %v369
    %v1388 = vunpack.c.h.b16 %v369
    %v1389 = vunpack.c.l.b16 %v370
    %v1390 = vunpack.c.h.b16 %v370
    %v1391 = vunpack.c.l.b16 %v371
    %v1392 = vunpack.c.h.b16 %v371
    %v1393 = vunpack.c.l.b16 %v372
    %v1394 = vunpack.c.h.b16 %v372
    %v1395 = vunpack.c.l.b16 %v373
    %v1396 = vunpack.c.h.b16 %v373
    %v1397 = vunpack.c.l.b16 %v374
    %v1398 = vunpack.c.h.b16 %v374
    %v1399 = vunpack.c.l.b16 %v375
    %v1400 = vunpack.c.h.b16 %v375
    %v1401 = vunpack.c.l.b16 %v376
    %v1402 = vunpack.c.h.b16 %v376
    %v1403 = vunpack.c.l.b16 %v377
    %v1404 = vunpack.c.h.b16 %v377
    %v1405 = vunpack.c.l.b16 %v378
    %v1406 = vunpack.c.h.b16 %v378
    %v1407 = vunpack.c.l.b16 %v379
    %v1408 = vunpack.c.h.b16 %v379
    %v1409 = vunpack.c.l.b16 %v380
    %v1410 = vunpack.c.h.b16 %v380
    %v1411 = vunpack.c.l.b16 %v381
    %v1412 = vunpack.c.h.b16 %v381
    %v1413 = vunpack.c.l.b16 %v382
    %v1414 = vunpack.c.h.b16 %v382
    %v1415 = vunpack.c.l.b16 %v383
    %v1416 = vunpack.c.h.b16 %v383
    %v1417 = vunpack.c.l.b16 %v384
    %v1418 = vunpack.c.h.b16 %v384
    %v1419 = vunpack.c.l.b16 %v385
    %v1420 = vunpack.c.h.b16 %v385
    %v1421 = vunpack.c.l.b16 %v386
    %v1422 = vunpack.c.h.b16 %v386
    %v1423 = vunpack.c.l.b16 %v387
    %v1424 = vunpack.c.h.b16 %v387
    %v1425 = vunpack.c.l.b16 %v388
    %v1426 = vunpack.c.h.b16 %v388
    %v1427 = vunpack.c.l.b16 %v389
    %v1428 = vunpack.c.h.b16 %v389
    %v1429 = vunpack.c.l.b16 %v390
    %v1430 = vunpack.c.h.b16 %v390
    %v1431 = vunpack.c.l.b16 %v391
    %v1432 = vunpack.c.h.b16 %v391
    %v1433 = vunpack.c.l.b16 %v392
    %v1434 = vunpack.c.h.b16 %v392
    %v1435 = vunpack.c.l.b16 %v393
    %v1436 = vunpack.c.h.b16 %v393
    %v1437 = vunpack.c.l.b16 %v394
    %v1438 = vunpack.c.h.b16 %v394
    %v1439 = vunpack.c.l.b16 %v395
    %v1440 = vunpack.c.h.b16 %v395
    %v1441 = vunpack.c.l.b16 %v396
    %v1442 = vunpack.c.h.b16 %v396
    %v1443 = vunpack.c.l.b16 %v397
    %v1444 = vunpack.c.h.b16 %v397
    %v1445 = vunpack.c.l.b16 %v398
    %v1446 = vunpack.c.h.b16 %v398
    %v1447 = vunpack.c.l.b16 %v399
    %v1448 = vunpack.c.h.b16 %v399
    %v1449 = vunpack.c.l.b16 %v400
    %v1450 = vunpack.c.h.b16 %v400
    %v1451 = vunpack.c.l.b16 %v401
    %v1452 = vunpack.c.h.b16 %v401
    %v1453 = vunpack.c.l.b16 %v402
    %v1454 = vunpack.c.h.b16 %v402
    %v1455 = vunpack.c.l.b16 %v403
    %v1456 = vunpack.c.h.b16 %v403
    %v1457 = vunpack.c.l.b16 %v404
    %v1458 = vunpack.c.h.b16 %v404
    %v1459 = vunpack.c.l.b16 %v405
    %v1460 = vunpack.c.h.b16 %v405
    %v1461 = vunpack.c.l.b16 %v406
    %v1462 = vunpack.c.h.b16 %v406
    %v1463 = vunpack.c.l.b16 %v407
    %v1464 = vunpack.c.h.b16 %v407
    %v1465 = vunpack.c.l.b16 %v408
    %v1466 = vunpack.c.h.b16 %v408
    %v1467 = vunpack.c.l.b16 %v409
    %v1468 = vunpack.c.h.b16 %v409
    %v1469 = vunpack.c.l.b16 %v410
    %v1470 = vunpack.c.h.b16 %v410
    %v1471 = vunpack.c.l.b16 %v411
    %v1472 = vunpack.c.h.b16 %v411
    %v1473 = vunpack.c.l.b16 %v412
    %v1474 = vunpack.c.h.b16 %v412
    %v1475 = vunpack.c.l.b16 %v413
    %v1476 = vunpack.c.h.b16 %v413
    %v1477 = vunpack.c.l.b16 %v414
    %v1478 = vunpack.c.h.b16 %v414
    %v1479 = vunpack.c.l.b16 %v415
    %v1480 = vunpack.c.h.b16 %v415
    %v1481 = vunpack.c.l.b16 %v416
    %v1482 = vunpack.c.h.b16 %v416
    %v1483 = vunpack.c.l.b16 %v417
    %v1484 = vunpack.c.h.b16 %v417
    %v1485 = vunpack.c.l.b16 %v418
    %v1486 = vunpack.c.h.b16 %v418
    %v1487 = vunpack.c.l.b16 %v419
    %v1488 = vunpack.c.h.b16 %v419
    %v1489 = vunpack.c.l.b16 %v420
    %v1490 = vunpack.c.h.b16 %v420
    %v1491 = vunpack.c.l.b16 %v421
    %v1492 = vunpack.c.h.b16 %v421
    %v1493 = vunpack.c.l.b16 %v422
    %v1494 = vunpack.c.h.b16 %v422
    %v1495 = vunpack.c.l.b16 %v423
    %v1496 = vunpack.c.h.b16 %v423
    %v1497 = vunpack.c.l.b16 %v424
    %v1498 = vunpack.c.h.b16 %v424
    %v1499 = vunpack.c.l.b16 %v425
    %v1500 = vunpack.c.h.b16 %v425
    %v1501 = vunpack.c.l.b16 %v426
    %v1502 = vunpack.c.h.b16 %v426
    %v1503 = vunpack.c.l.b16 %v427
    %v1504 = vunpack.c.h.b16 %v427
    %v1505 = vunpack.c.l.b16 %v428
    %v1506 = vunpack.c.h.b16 %v428
    %v1507 = vunpack.c.l.b16 %v429
    %v1508 = vunpack.c.h.b16 %v429
    %v1509 = vunpack.c.l.b16 %v430
    %v1510 = vunpack.c.h.b16 %v430
    %v1511 = vunpack.c.l.b16 %v431
    %v1512 = vunpack.c.h.b16 %v431
    %v1513 = vunpack.c.l.b16 %v432
    %v1514 = vunpack.c.h.b16 %v432
    %v1515 = vunpack.c.l.b16 %v433
    %v1516 = vunpack.c.h.b16 %v433
    %v1517 = vunpack.c.l.b16 %v434
    %v1518 = vunpack.c.h.b16 %v434
    %v1519 = vunpack.c.l.b16 %v435
    %v1520 = vunpack.c.h.b16 %v435
    %v1521 = vunpack.c.l.b16 %v436
    %v1522 = vunpack.c.h.b16 %v436
    %v1523 = vunpack.c.l.b16 %v437
    %v1524 = vunpack.c.h.b16 %v437
    %v1525 = vunpack.c.l.b16 %v438
    %v1526 = vunpack.c.h.b16 %v438
    %v1527 = vunpack.c.l.b16 %v439
    %v1528 = vunpack.c.h.b16 %v439
    %v1529 = vunpack.c.l.b16 %v440
    %v1530 = vunpack.c.h.b16 %v440
    %v1531 = vunpack.c.l.b16 %v441
    %v1532 = vunpack.c.h.b16 %v441
    %v1533 = vunpack.c.l.b16 %v442
    %v1534 = vunpack.c.h.b16 %v442
    %v1535 = vunpack.c.l.b16 %v443
    %v1536 = vunpack.c.h.b16 %v443
    %v1537 = vunpack.c.l.b16 %v444
    %v1538 = vunpack.c.h.b16 %v444
    %v1539 = vunpack.c.l.b16 %v445
    %v1540 = vunpack.c.h.b16 %v445
    %v1541 = vunpack.c.l.b16 %v446
    %v1542 = vunpack.c.h.b16 %v446
    %v1543 = vunpack.c.l.b16 %v447
    %v1544 = vunpack.c.h.b16 %v447
    %v1545 = vunpack.c.l.b16 %v448
    %v1546 = vunpack.c.h.b16 %v448
    %v1547 = vunpack.c.l.b16 %v449
    %v1548 = vunpack.c.h.b16 %v449
    %v1549 = vunpack.c.l.b16 %v450
    %v1550 = vunpack.c.h.b16 %v450
    %v1551 = vunpack.c.l.b16 %v451
    %v1552 = vunpack.c.h.b16 %v451
    %v1553 = vunpack.c.l.b16 %v452
    %v1554 = vunpack.c.h.b16 %v452
    %v1555 = vunpack.c.l.b16 %v453
    %v1556 = vunpack.c.h.b16 %v453
    %v1557 = vunpack.c.l.b16 %v454
    %v1558 = vunpack.c.h.b16 %v454
    %v1559 = vunpack.c.l.b16 %v455
    %v1560 = vunpack.c.h.b16 %v455
    %v1561 = vunpack.c.l.b16 %v456
    %v1562 = vunpack.c.h.b16 %v456
    %v1563 = vunpack.c.l.b16 %v457
    %v1564 = vunpack.c.h.b16 %v457
    %v1565 = vunpack.c.l.b16 %v458
    %v1566 = vunpack.c.h.b16 %v458
    %v1567 = vunpack.c.l.b16 %v459
    %v1568 = vunpack.c.h.b16 %v459
    %v1569 = vunpack.c.l.b16 %v460
    %v1570 = vunpack.c.h.b16 %v460
    %v1571 = vunpack.c.l.b16 %v461
    %v1572 = vunpack.c.h.b16 %v461
    %v1573 = vunpack.c.l.b16 %v462
    %v1574 = vunpack.c.h.b16 %v462
    %v1575 = vunpack.c.l.b16 %v463
    %v1576 = vunpack.c.h.b16 %v463
    %v1577 = vunpack.c.l.b16 %v464
    %v1578 = vunpack.c.h.b16 %v464
    %v1579 = vunpack.c.l.b16 %v465
    %v1580 = vunpack.c.h.b16 %v465
    %v1581 = vunpack.c.l.b16 %v466
    %v1582 = vunpack.c.h.b16 %v466
    %v1583 = vunpack.c.l.b16 %v467
    %v1584 = vunpack.c.h.b16 %v467
    %v1585 = vunpack.c.l.b16 %v468
    %v1586 = vunpack.c.h.b16 %v468
    %v1587 = vunpack.c.l.b16 %v469
    %v1588 = vunpack.c.h.b16 %v469
    %v1589 = vunpack.c.l.b16 %v470
    %v1590 = vunpack.c.h.b16 %v470
    %v1591 = vunpack.c.l.b16 %v471
    %v1592 = vunpack.c.h.b16 %v471
    %v1593 = vunpack.c.l.b16 %v472
    %v1594 = vunpack.c.h.b16 %v472
    %v1595 = vunpack.c.l.b16 %v473
    %v1596 = vunpack.c.h.b16 %v473
    %v1597 = vunpack.c.l.b16 %v474
    %v1598 = vunpack.c.h.b16 %v474
    %v1599 = vunpack.c.l.b16 %v475
    %v1600 = vunpack.c.h.b16 %v475
    %v1601 = vunpack.c.l.b16 %v476
    %v1602 = vunpack.c.h.b16 %v476
    %v1603 = vunpack.c.l.b16 %v477
    %v1604 = vunpack.c.h.b16 %v477
    %v1605 = vunpack.c.l.b16 %v478
    %v1606 = vunpack.c.h.b16 %v478
    %v1607 = vunpack.c.l.b16 %v479
    %v1608 = vunpack.c.h.b16 %v479
    %v1609 = vunpack.c.l.b16 %v480
    %v1610 = vunpack.c.h.b16 %v480
    %v1611 = vunpack.c.l.b16 %v481
    %v1612 = vunpack.c.h.b16 %v481
    %v1613 = vunpack.c.l.b16 %v482
    %v1614 = vunpack.c.h.b16 %v482
    %v1615 = vunpack.c.l.b16 %v483
    %v1616 = vunpack.c.h.b16 %v483
    %v1617 = vunpack.c.l.b16 %v484
    %v1618 = vunpack.c.h.b16 %v484
    %v1619 = vunpack.c.l.b16 %v485
    %v1620 = vunpack.c.h.b16 %v485
    %v1621 = vunpack.c.l.b16 %v486
    %v1622 = vunpack.c.h.b16 %v486
    %v1623 = vunpack.c.l.b16 %v487
    %v1624 = vunpack.c.h.b16 %v487
    %v1625 = vunpack.c.l.b16 %v488
    %v1626 = vunpack.c.h.b16 %v488
    %v1627 = vunpack.c.l.b16 %v489
    %v1628 = vunpack.c.h.b16 %v489
    %v1629 = vunpack.c.l.b16 %v490
    %v1630 = vunpack.c.h.b16 %v490
    %v1631 = vunpack.c.l.b16 %v491
    %v1632 = vunpack.c.h.b16 %v491
    %v1633 = vunpack.c.l.b16 %v492
    %v1634 = vunpack.c.h.b16 %v492
    %v1635 = vunpack.c.l.b16 %v493
    %v1636 = vunpack.c.h.b16 %v493
    %v1637 = vunpack.c.l.b16 %v494
    %v1638 = vunpack.c.h.b16 %v494
    %v1639 = vunpack.c.l.b16 %v495
    %v1640 = vunpack.c.h.b16 %v495
    %v1641 = vunpack.c.l.b16 %v496
    %v1642 = vunpack.c.h.b16 %v496
    %v1643 = vunpack.c.l.b16 %v497
    %v1644 = vunpack.c.h.b16 %v497
    %v1645 = vunpack.c.l.b16 %v498
    %v1646 = vunpack.c.h.b16 %v498
    %v1647 = vunpack.c.l.b16 %v499
    %v1648 = vunpack.c.h.b16 %v499
    %v1649 = vunpack.c.l.b16 %v500
    %v1650 = vunpack.c.h.b16 %v500
    %v1651 = vunpack.c.l.b16 %v501
    %v1652 = vunpack.c.h.b16 %v501
    %v1653 = vunpack.c.l.b16 %v502
    %v1654 = vunpack.c.h.b16 %v502
    %v1655 = vunpack.c.l.b16 %v503
    %v1656 = vunpack.c.h.b16 %v503
    %v1657 = vunpack.c.l.b16 %v504
    %v1658 = vunpack.c.h.b16 %v504
    %v1659 = vunpack.c.l.b16 %v505
    %v1660 = vunpack.c.h.b16 %v505
    %v1661 = vunpack.c.l.b16 %v506
    %v1662 = vunpack.c.h.b16 %v506
    %v1663 = vunpack.c.l.b16 %v507
    %v1664 = vunpack.c.h.b16 %v507
    %v1665 = vunpack.c.l.b16 %v508
    %v1666 = vunpack.c.h.b16 %v508
    %v1667 = vunpack.c.l.b16 %v509
    %v1668 = vunpack.c.h.b16 %v509
    %v1669 = vunpack.c.l.b16 %v510
    %v1670 = vunpack.c.h.b16 %v510
    %v1671 = vunpack.c.l.b16 %v511
    %v1672 = vunpack.c.h.b16 %v511
    %v1673 = vunpack.c.l.b16 %v512
    %v1674 = vunpack.c.h.b16 %v512
    %v1675 = vunpack.c.l.b16 %v513
    %v1676 = vunpack.c.h.b16 %v513
    %v1677 = vunpack.c.l.b16 %v514
    %v1678 = vunpack.c.h.b16 %v514
    %v1679 = vunpack.c.l.b16 %v515
    %v1680 = vunpack.c.h.b16 %v515
    %v1681 = vunpack.c.l.b16 %v516
    %v1682 = vunpack.c.h.b16 %v516
    %v1683 = vunpack.c.l.b16 %v517
    %v1684 = vunpack.c.h.b16 %v517
    %v1685 = vunpack.c.l.b16 %v518
    %v1686 = vunpack.c.h.b16 %v518
    %v1687 = vunpack.c.l.b16 %v519
    %v1688 = vunpack.c.h.b16 %v519
    %v1689 = vunpack.c.l.b16 %v520
    %v1690 = vunpack.c.h.b16 %v520
    %v1691 = vunpack.c.l.b16 %v521
    %v1692 = vunpack.c.h.b16 %v521
    %v1693 = vunpack.c.l.b16 %v522
    %v1694 = vunpack.c.h.b16 %v522
    %v1695 = vunpack.c.l.b16 %v523
    %v1696 = vunpack.c.h.b16 %v523
    %v1697 = vunpack.c.l.b16 %v524
    %v1698 = vunpack.c.h.b16 %v524
    %v1699 = vpack.c.b16 %v935, %v931
    %v1700 = vpack.c.b16 %v936, %v932
    %v1701 = vpack.c.b16 %v937, %v933
    %v1702 = vpack.c.b16 %v938, %v934
    %v1703 = vpack.c.b16 %v943, %v939
    %v1704 = vpack.c.b16 %v944, %v940
    %v1705 = vpack.c.b16 %v945, %v941
    %v1706 = vpack.c.b16 %v946, %v942
    %v1707 = vpack.c.b16 %v951, %v947
    %v1708 = vpack.c.b16 %v952, %v948
    %v1709 = vpack.c.b16 %v953, %v949
    %v1710 = vpack.c.b16 %v954, %v950
    %v1711 = vpack.c.b16 %v959, %v955
    %v1712 = vpack.c.b16 %v960, %v956
    %v1713 = vpack.c.b16 %v961, %v957
    %v1714 = vpack.c.b16 %v962, %v958
    %v1715 = vpack.c.b16 %v967, %v963
    %v1716 = vpack.c.b16 %v968, %v964
    %v1717 = vpack.c.b16 %v969, %v965
    %v1718 = vpack.c.b16 %v970, %v966
    %v1719 = vpack.c.b16 %v975, %v971
    %v1720 = vpack.c.b16 %v976, %v972
    %v1721 = vpack.c.b16 %v977, %v973
    %v1722 = vpack.c.b16 %v978, %v974
    %v1723 = vpack.c.b16 %v983, %v979
    %v1724 = vpack.c.b16 %v984, %v980
    %v1725 = vpack.c.b16 %v985, %v981
    %v1726 = vpack.c.b16 %v986, %v982
    %v1727 = vpack.c.b16 %v991, %v987
    %v1728 = vpack.c.b16 %v992, %v988
    %v1729 = vpack.c.b16 %v993, %v989
    %v1730 = vpack.c.b16 %v994, %v990
    %v1731 = vpack.c.b16 %v999, %v995
    %v1732 = vpack.c.b16 %v1000, %v996
    %v1733 = vpack.c.b16 %v1001, %v997
    %v1734 = vpack.c.b16 %v1002, %v998
    %v1735 = vpack.c.b16 %v1007, %v1003
    %v1736 = vpack.c.b16 %v1008, %v1004
    %v1737 = vpack.c.b16 %v1009, %v1005
    %v1738 = vpack.c.b16 %v1010, %v1006
    %v1739 = vpack.c.b16 %v1015, %v1011
    %v1740 = vpack.c.b16 %v1016, %v1012
    %v1741 = vpack.c.b16 %v1017, %v1013
    %v1742 = vpack.c.b16 %v1018, %v1014
    %v1743 = vpack.c.b16 %v1023, %v1019
    %v1744 = vpack.c.b16 %v1024, %v1020
    %v1745 = vpack.c.b16 %v1025, %v1021
    %v1746 = vpack.c.b16 %v1026, %v1022
    %v1747 = vpack.c.b16 %v1031, %v1027
    %v1748 = vpack.c.b16 %v1032, %v1028
    %v1749 = vpack.c.b16 %v1033, %v1029
    %v1750 = vpack.c.b16 %v1034, %v1030
    %v1751 = vpack.c.b16 %v1039, %v1035
    %v1752 = vpack.c.b16 %v1040, %v1036
    %v1753 = vpack.c.b16 %v1041, %v1037
    %v1754 = vpack.c.b16 %v1042, %v1038
    %v1755 = vpack.c.b16 %v1047, %v1043
    %v1756 = vpack.c.b16 %v1048, %v1044
    %v1757 = vpack.c.b16 %v1049, %v1045
    %v1758 = vpack.c.b16 %v1050, %v1046
    %v1759 = vpack.c.b16 %v1055, %v1051
    %v1760 = vpack.c.b16 %v1056, %v1052
    %v1761 = vpack.c.b16 %v1057, %v1053
    %v1762 = vpack.c.b16 %v1058, %v1054
    %v1763 = vpack.c.b16 %v1063, %v1059
    %v1764 = vpack.c.b16 %v1064, %v1060
    %v1765 = vpack.c.b16 %v1065, %v1061
    %v1766 = vpack.c.b16 %v1066, %v1062
    %v1767 = vpack.c.b16 %v1071, %v1067
    %v1768 = vpack.c.b16 %v1072, %v1068
    %v1769 = vpack.c.b16 %v1073, %v1069
    %v1770 = vpack.c.b16 %v1074, %v1070
    %v1771 = vpack.c.b16 %v1079, %v1075
    %v1772 = vpack.c.b16 %v1080, %v1076
    %v1773 = vpack.c.b16 %v1081, %v1077
    %v1774 = vpack.c.b16 %v1082, %v1078
    %v1775 = vpack.c.b16 %v1087, %v1083
    %v1776 = vpack.c.b16 %v1088, %v1084
    %v1777 = vpack.c.b16 %v1089, %v1085
    %v1778 = vpack.c.b16 %v1090, %v1086
    %v1779 = vpack.c.b16 %v1095, %v1091
    %v1780 = vpack.c.b16 %v1096, %v1092
    %v1781 = vpack.c.b16 %v1097, %v1093
    %v1782 = vpack.c.b16 %v1098, %v1094
    %v1783 = vpack.c.b16 %v1103, %v1099
    %v1784 = vpack.c.b16 %v1104, %v1100
    %v1785 = vpack.c.b16 %v1105, %v1101
    %v1786 = vpack.c.b16 %v1106, %v1102
    %v1787 = vpack.c.b16 %v1111, %v1107
    %v1788 = vpack.c.b16 %v1112, %v1108
    %v1789 = vpack.c.b16 %v1113, %v1109
    %v1790 = vpack.c.b16 %v1114, %v1110
    %v1791 = vpack.c.b16 %v1119, %v1115
    %v1792 = vpack.c.b16 %v1120, %v1116
    %v1793 = vpack.c.b16 %v1121, %v1117
    %v1794 = vpack.c.b16 %v1122, %v1118
    %v1795 = vpack.c.b16 %v1127, %v1123
    %v1796 = vpack.c.b16 %v1128, %v1124
    %v1797 = vpack.c.b16 %v1129, %v1125
    %v1798 = vpack.c.b16 %v1130, %v1126
    %v1799 = vpack.c.b16 %v1135, %v1131
    %v1800 = vpack.c.b16 %v1136, %v1132
    %v1801 = vpack.c.b16 %v1137, %v1133
    %v1802 = vpack.c.b16 %v1138, %v1134
    %v1803 = vpack.c.b16 %v1143, %v1139
    %v1804 = vpack.c.b16 %v1144, %v1140
    %v1805 = vpack.c.b16 %v1145, %v1141
    %v1806 = vpack.c.b16 %v1146, %v1142
    %v1807 = vpack.c.b16 %v1151, %v1147
    %v1808 = vpack.c.b16 %v1152, %v1148
    %v1809 = vpack.c.b16 %v1153, %v1149
    %v1810 = vpack.c.b16 %v1154, %v1150
    %v1811 = vpack.c.b16 %v1159, %v1155
    %v1812 = vpack.c.b16 %v1160, %v1156
    %v1813 = vpack.c.b16 %v1161, %v1157
    %v1814 = vpack.c.b16 %v1162, %v1158
    %v1815 = vpack.c.b16 %v1167, %v1163
    %v1816 = vpack.c.b16 %v1168, %v1164
    %v1817 = vpack.c.b16 %v1169, %v1165
    %v1818 = vpack.c.b16 %v1170, %v1166
    %v1819 = vpack.c.b16 %v1175, %v1171
    %v1820 = vpack.c.b16 %v1176, %v1172
    %v1821 = vpack.c.b16 %v1177, %v1173
    %v1822 = vpack.c.b16 %v1178, %v1174
    %v1823 = vpack.c.b16 %v1183, %v1179
    %v1824 = vpack.c.b16 %v1184, %v1180
    %v1825 = vpack.c.b16 %v1185, %v1181
    %v1826 = vpack.c.b16 %v1186, %v1182
    %v1827 = vpack.c.b16 %v1191, %v1187
    %v1828 = vpack.c.b16 %v1192, %v1188
    %v1829 = vpack.c.b16 %v1193, %v1189
    %v1830 = vpack.c.b16 %v1194, %v1190
    %v1831 = vpack.c.b16 %v1199, %v1195
    %v1832 = vpack.c.b16 %v1200, %v1196
    %v1833 = vpack.c.b16 %v1201, %v1197
    %v1834 = vpack.c.b16 %v1202, %v1198
    %v1835 = vpack.c.b16 %v1207, %v1203
    %v1836 = vpack.c.b16 %v1208, %v1204
    %v1837 = vpack.c.b16 %v1209, %v1205
    %v1838 = vpack.c.b16 %v1210, %v1206
    %v1839 = vpack.c.b16 %v1215, %v1211
    %v1840 = vpack.c.b16 %v1216, %v1212
    %v1841 = vpack.c.b16 %v1217, %v1213
    %v1842 = vpack.c.b16 %v1218, %v1214
    %v1843 = vpack.c.b16 %v1223, %v1219
    %v1844 = vpack.c.b16 %v1224, %v1220
    %v1845 = vpack.c.b16 %v1225, %v1221
    %v1846 = vpack.c.b16 %v1226, %v1222
    %v1847 = vpack.c.b16 %v1231, %v1227
    %v1848 = vpack.c.b16 %v1232, %v1228
    %v1849 = vpack.c.b16 %v1233, %v1229
    %v1850 = vpack.c.b16 %v1234, %v1230
    %v1851 = vpack.c.b16 %v1239, %v1235
    %v1852 = vpack.c.b16 %v1240, %v1236
    %v1853 = vpack.c.b16 %v1241, %v1237
    %v1854 = vpack.c.b16 %v1242, %v1238
    %v1855 = vpack.c.b16 %v1247, %v1243
    %v1856 = vpack.c.b16 %v1248, %v1244
    %v1857 = vpack.c.b16 %v1249, %v1245
    %v1858 = vpack.c.b16 %v1250, %v1246
    %v1859 = vpack.c.b16 %v1255, %v1251
    %v1860 = vpack.c.b16 %v1256, %v1252
    %v1861 = vpack.c.b16 %v1257, %v1253
    %v1862 = vpack.c.b16 %v1258, %v1254
    %v1863 = vpack.c.b16 %v1263, %v1259
    %v1864 = vpack.c.b16 %v1264, %v1260
    %v1865 = vpack.c.b16 %v1265, %v1261
    %v1866 = vpack.c.b16 %v1266, %v1262
    %v1867 = vpack.c.b16 %v1271, %v1267
    %v1868 = vpack.c.b16 %v1272, %v1268
    %v1869 = vpack.c.b16 %v1273, %v1269
    %v1870 = vpack.c.b16 %v1274, %v1270
    %v1871 = vpack.c.b16 %v1279, %v1275
    %v1872 = vpack.c.b16 %v1280, %v1276
    %v1873 = vpack.c.b16 %v1281, %v1277
    %v1874 = vpack.c.b16 %v1282, %v1278
    %v1875 = vpack.c.b16 %v1287, %v1283
    %v1876 = vpack.c.b16 %v1288, %v1284
    %v1877 = vpack.c.b16 %v1289, %v1285
    %v1878 = vpack.c.b16 %v1290, %v1286
    %v1879 = vpack.c.b16 %v1295, %v1291
    %v1880 = vpack.c.b16 %v1296, %v1292
    %v1881 = vpack.c.b16 %v1297, %v1293
    %v1882 = vpack.c.b16 %v1298, %v1294
    %v1883 = vpack.c.b16 %v1303, %v1299
    %v1884 = vpack.c.b16 %v1304, %v1300
    %v1885 = vpack.c.b16 %v1305, %v1301
    %v1886 = vpack.c.b16 %v1306, %v1302
    %v1887 = vpack.c.b16 %v1311, %v1307
    %v1888 = vpack.c.b16 %v1312, %v1308
    %v1889 = vpack.c.b16 %v1313, %v1309
    %v1890 = vpack.c.b16 %v1314, %v1310
    %v1891 = vpack.c.b16 %v1319, %v1315
    %v1892 = vpack.c.b16 %v1320, %v1316
    %v1893 = vpack.c.b16 %v1321, %v1317
    %v1894 = vpack.c.b16 %v1322, %v1318
    %v1895 = vpack.c.b16 %v1327, %v1323
    %v1896 = vpack.c.b16 %v1328, %v1324
    %v1897 = vpack.c.b16 %v1329, %v1325
    %v1898 = vpack.c.b16 %v1330, %v1326
    %v1899 = vpack.c.b16 %v1335, %v1331
    %v1900 = vpack.c.b16 %v1336, %v1332
    %v1901 = vpack.c.b16 %v1337, %v1333
    %v1902 = vpack.c.b16 %v1338, %v1334
    %v1903 = vpack.c.b16 %v1343, %v1339
    %v1904 = vpack.c.b16 %v1344, %v1340
    %v1905 = vpack.c.b16 %v1345, %v1341
    %v1906 = vpack.c.b16 %v1346, %v1342
    %v1907 = vpack.c.b16 %v1351, %v1347
    %v1908 = vpack.c.b16 %v1352, %v1348
    %v1909 = vpack.c.b16 %v1353, %v1349
    %v1910 = vpack.c.b16 %v1354, %v1350
    %v1911 = vpack.c.b16 %v1359, %v1355
    %v1912 = vpack.c.b16 %v1360, %v1356
    %v1913 = vpack.c.b16 %v1361, %v1357
    %v1914 = vpack.c.b16 %v1362, %v1358
    %v1915 = vpack.c.b16 %v1367, %v1363
    %v1916 = vpack.c.b16 %v1368, %v1364
    %v1917 = vpack.c.b16 %v1369, %v1365
    %v1918 = vpack.c.b16 %v1370, %v1366
    %v1919 = vpack.c.b16 %v1375, %v1371
    %v1920 = vpack.c.b16 %v1376, %v1372
    %v1921 = vpack.c.b16 %v1377, %v1373
    %v1922 = vpack.c.b16 %v1378, %v1374
    %v1923 = vpack.c.b16 %v1383, %v1379
    %v1924 = vpack.c.b16 %v1384, %v1380
    %v1925 = vpack.c.b16 %v1385, %v1381
    %v1926 = vpack.c.b16 %v1386, %v1382
    %v1927 = vpack.c.b16 %v1391, %v1387
    %v1928 = vpack.c.b16 %v1392, %v1388
    %v1929 = vpack.c.b16 %v1393, %v1389
    %v1930 = vpack.c.b16 %v1394, %v1390
    %v1931 = vpack.c.b16 %v1399, %v1395
    %v1932 = vpack.c.b16 %v1400, %v1396
    %v1933 = vpack.c.b16 %v1401, %v1397
    %v1934 = vpack.c.b16 %v1402, %v1398
    %v1935 = vpack.c.b16 %v1407, %v1403
    %v1936 = vpack.c.b16 %v1408, %v1404
    %v1937 = vpack.c.b16 %v1409, %v1405
    %v1938 = vpack.c.b16 %v1410, %v1406
    %v1939 = vpack.c.b16 %v1415, %v1411
    %v1940 = vpack.c.b16 %v1416, %v1412
    %v1941 = vpack.c.b16 %v1417, %v1413
    %v1942 = vpack.c.b16 %v1418, %v1414
    %v1943 = vpack.c.b16 %v1423, %v1419
    %v1944 = vpack.c.b16 %v1424, %v1420
    %v1945 = vpack.c.b16 %v1425, %v1421
    %v1946 = vpack.c.b16 %v1426, %v1422
    %v1947 = vpack.c.b16 %v1431, %v1427
    %v1948 = vpack.c.b16 %v1432, %v1428
    %v1949 = vpack.c.b16 %v1433, %v1429
    %v1950 = vpack.c.b16 %v1434, %v1430
    %v1951 = vpack.c.b16 %v1439, %v1435
    %v1952 = vpack.c.b16 %v1440, %v1436
    %v1953 = vpack.c.b16 %v1441, %v1437
    %v1954 = vpack.c.b16 %v1442, %v1438
    %v1955 = vpack.c.b16 %v1447, %v1443
    %v1956 = vpack.c.b16 %v1448, %v1444
    %v1957 = vpack.c.b16 %v1449, %v1445
    %v1958 = vpack.c.b16 %v1450, %v1446
    %v1959 = vpack.c.b16 %v1455, %v1451
    %v1960 = vpack.c.b16 %v1456, %v1452
    %v1961 = vpack.c.b16 %v1457, %v1453
    %v1962 = vpack.c.b16 %v1458, %v1454
    %v1963 = vpack.c.b16 %v1463, %v1459
    %v1964 = vpack.c.b16 %v1464, %v1460
    %v1965 = vpack.c.b16 %v1465, %v1461
    %v1966 = vpack.c.b16 %v1466, %v1462
    %v1967 = vpack.c.b16 %v1471, %v1467
    %v1968 = vpack.c.b16 %v1472, %v1468
    %v1969 = vpack.c.b16 %v1473, %v1469
    %v1970 = vpack.c.b16 %v1474, %v1470
    %v1971 = vpack.c.b16 %v1479, %v1475
    %v1972 = vpack.c.b16 %v1480, %v1476
    %v1973 = vpack.c.b16 %v1481, %v1477
    %v1974 = vpack.c.b16 %v1482, %v1478
    %v1975 = vpack.c.b16 %v1487, %v1483
    %v1976 = vpack.c.b16 %v1488, %v1484
    %v1977 = vpack.c.b16 %v1489, %v1485
    %v1978 = vpack.c.b16 %v1490, %v1486
    %v1979 = vpack.c.b16 %v1495, %v1491
    %v1980 = vpack.c.b16 %v1496, %v1492
    %v1981 = vpack.c.b16 %v1497, %v1493
    %v1982 = vpack.c.b16 %v1498, %v1494
    %v1983 = vpack.c.b16 %v1503, %v1499
    %v1984 = vpack.c.b16 %v1504, %v1500
    %v1985 = vpack.c.b16 %v1505, %v1501
    %v1986 = vpack.c.b16 %v1506, %v1502
    %v1987 = vpack.c.b16 %v1511, %v1507
    %v1988 = vpack.c.b16 %v1512, %v1508
    %v1989 = vpack.c.b16 %v1513, %v1509
    %v1990 = vpack.c.b16 %v1514, %v1510
    %v1991 = vpack.c.b16 %v1519, %v1515
    %v1992 = vpack.c.b16 %v1520, %v1516
    %v1993 = vpack.c.b16 %v1521, %v1517
    %v1994 = vpack.c.b16 %v1522, %v1518
    %v1995 = vpack.c.b16 %v1527, %v1523
    %v1996 = vpack.c.b16 %v1528, %v1524
    %v1997 = vpack.c.b16 %v1529, %v1525
    %v1998 = vpack.c.b16 %v1530, %v1526
    %v1999 = vpack.c.b16 %v1535, %v1531
    %v2000 = vpack.c.b16 %v1536, %v1532
    %v2001 = vpack.c.b16 %v1537, %v1533
    %v2002 = vpack.c.b16 %v1538, %v1534
    %v2003 = vpack.c.b16 %v1543, %v1539
    %v2004 = vpack.c.b16 %v1544, %v1540
    %v2005 = vpack.c.b16 %v1545, %v1541
    %v2006 = vpack.c.b16 %v1546, %v1542
    %v2007 = vpack.c.b16 %v1551, %v1547
    %v2008 = vpack.c.b16 %v1552, %v1548
    %v2009 = vpack.c.b16 %v1553, %v1549
    %v2010 = vpack.c.b16 %v1554, %v1550
    %v2011 = vpack.c.b16 %v1559, %v1555
    %v2012 = vpack.c.b16 %v1560, %v1556
    %v2013 = vpack.c.b16 %v1561, %v1557
    %v2014 = vpack.c.b16 %v1562, %v1558
    %v2015 = vpack.c.b16 %v1567, %v1563
    %v2016 = vpack.c.b16 %v1568, %v1564
    %v2017 = vpack.c.b16 %v1569, %v1565
    %v2018 = vpack.c.b16 %v1570, %v1566
    %v2019 = vpack.c.b16 %v1575, %v1571
    %v2020 = vpack.c.b16 %v1576, %v1572
    %v2021 = vpack.c.b16 %v1577, %v1573
    %v2022 = vpack.c.b16 %v1578, %v1574
    %v2023 = vpack.c.b16 %v1583, %v1579
    %v2024 = vpack.c.b16 %v1584, %v1580
    %v2025 = vpack.c.b16 %v1585, %v1581
    %v2026 = vpack.c.b16 %v1586, %v1582
    %v2027 = vpack.c.b16 %v1591, %v1587
    %v2028 = vpack.c.b16 %v1592, %v1588
    %v2029 = vpack.c.b16 %v1593, %v1589
    %v2030 = vpack.c.b16 %v1594, %v1590
    %v2031 = vpack.c.b16 %v1599, %v1595
    %v2032 = vpack.c.b16 %v1600, %v1596
    %v2033 = vpack.c.b16 %v1601, %v1597
    %v2034 = vpack.c.b16 %v1602, %v1598
    %v2035 = vpack.c.b16 %v1607, %v1603
    %v2036 = vpack.c.b16 %v1608, %v1604
    %v2037 = vpack.c.b16 %v1609, %v1605
    %v2038 = vpack.c.b16 %v1610, %v1606
    %v2039 = vpack.c.b16 %v1615, %v1611
    %v2040 = vpack.c.b16 %v1616, %v1612
    %v2041 = vpack.c.b16 %v1617, %v1613
    %v2042 = vpack.c.b16 %v1618, %v1614
    %v2043 = vpack.c.b16 %v1623, %v1619
    %v2044 = vpack.c.b16 %v1624, %v1620
    %v2045 = vpack.c.b16 %v1625, %v1621
    %v2046 = vpack.c.b16 %v1626, %v1622
    %v2047 = vpack.c.b16 %v1631, %v1627
    %v2048 = vpack.c.b16 %v1632, %v1628
    %v2049 = vpack.c.b16 %v1633, %v1629
    %v2050 = vpack.c.b16 %v1634, %v1630
    %v2051 = vpack.c.b16 %v1639, %v1635
    %v2052 = vpack.c.b16 %v1640, %v1636
    %v2053 = vpack.c.b16 %v1641, %v1637
    %v2054 = vpack.c.b16 %v1642, %v1638
    %v2055 = vpack.c.b16 %v1647, %v1643
    %v2056 = vpack.c.b16 %v1648, %v1644
    %v2057 = vpack.c.b16 %v1649, %v1645
    %v2058 = vpack.c.b16 %v1650, %v1646
    %v2059 = vpack.c.b16 %v1655, %v1651
    %v2060 = vpack.c.b16 %v1656, %v1652
    %v2061 = vpack.c.b16 %v1657, %v1653
    %v2062 = vpack.c.b16 %v1658, %v1654
    %v2063 = vpack.c.b16 %v1663, %v1659
    %v2064 = vpack.c.b16 %v1664, %v1660
    %v2065 = vpack.c.b16 %v1665, %v1661
    %v2066 = vpack.c.b16 %v1666, %v1662
    %v2067 = vpack.c.b16 %v1671, %v1667
    %v2068 = vpack.c.b16 %v1672, %v1668
    %v2069 = vpack.c.b16 %v1673, %v1669
    %v2070 = vpack.c.b16 %v1674, %v1670
    %v2071 = vpack.c.b16 %v1679, %v1675
    %v2072 = vpack.c.b16 %v1680, %v1676
    %v2073 = vpack.c.b16 %v1681, %v1677
    %v2074 = vpack.c.b16 %v1682, %v1678
    %v2075 = vpack.c.b16 %v1687, %v1683
    %v2076 = vpack.c.b16 %v1688, %v1684
    %v2077 = vpack.c.b16 %v1689, %v1685
    %v2078 = vpack.c.b16 %v1690, %v1686
    %v2079 = vpack.c.b16 %v1695, %v1691
    %v2080 = vpack.c.b16 %v1696, %v1692
    %v2081 = vpack.c.b16 %v1697, %v1693
    %v2082 = vpack.c.b16 %v1698, %v1694
    %2467 = vmatprep.subr.bf16.mxu0 %v1700
    %2468 = vmatpush1.bf16.msra.mxu0 %v1699
    %2469 = vmatprep.subr.bf16.mxu0 %v1704
    %2470 = vmatpush1.bf16.msra.mxu0 %v1703
    %2471 = vmatprep.subr.bf16.mxu0 %v1708
    %2472 = vmatpush1.bf16.msra.mxu0 %v1707
    %2473 = vmatprep.subr.bf16.mxu0 %v1712
    %2474 = vmatpush1.bf16.msra.mxu0 %v1711
    %2475 = vmatprep.subr.bf16.mxu0 %v1716
    %2476 = vmatpush1.bf16.msra.mxu0 %v1715
    %2477 = vmatprep.subr.bf16.mxu0 %v1720
    %2478 = vmatpush1.bf16.msra.mxu0 %v1719
    %2479 = vmatprep.subr.bf16.mxu0 %v1724
    %2480 = vmatpush1.bf16.msra.mxu0 %v1723
    %2481 = vmatprep.subr.bf16.mxu0 %v1728
    %2482 = vmatpush1.bf16.msra.mxu0 %v1727
    %2483 = vmatprep.subr.bf16.mxu0 %v1732
    %2484 = vmatpush1.bf16.msra.mxu0 %v1731
    %2485 = vmatprep.subr.bf16.mxu0 %v1736
    %2486 = vmatpush1.bf16.msra.mxu0 %v1735
    %2487 = vmatprep.subr.bf16.mxu0 %v1740
    %2488 = vmatpush1.bf16.msra.mxu0 %v1739
    %2489 = vmatprep.subr.bf16.mxu0 %v1744
    %2490 = vmatpush1.bf16.msra.mxu0 %v1743
    %2491 = vmatprep.subr.bf16.mxu0 %v1748
    %2492 = vmatpush1.bf16.msra.mxu0 %v1747
    %2493 = vmatprep.subr.bf16.mxu0 %v1752
    %2494 = vmatpush1.bf16.msra.mxu0 %v1751
    %2495 = vmatprep.subr.bf16.mxu0 %v1756
    %2496 = vmatpush1.bf16.msra.mxu0 %v1755
    %2497 = vmatprep.subr.bf16.mxu0 %v1760
    %2498 = vmatpush1.bf16.msra.mxu0 %v1759
    %2499 = vmatprep.mubr.bf16.mxu0 %v130
    %2500 = vmatmul.mubr.bf16.gmra.mrb[0].mxu0 %v129
    %v2501 = vpop.f32.mrb[0].mxu0
    %v2502 = vadd.f32 %v530, %v2501
    %v2503 = vpop.f32.mrb[0].mxu0
    %v2504 = vadd.f32 %v534, %v2503
    %v2505 = vpop.f32.mrb[0].mxu0
    %v2506 = vadd.f32 %v530, %v2505
    %v2507 = vpop.f32.mrb[0].mxu0
    %v2508 = vadd.f32 %v534, %v2507
    %2509 = vdwg.mxu0
    %2510 = vmatprep.subr.bf16.mxu0 %v1764
    %2511 = vmatpush1.bf16.msra.mxu0 %v1763
    %2512 = vmatprep.subr.bf16.mxu0 %v1768
    %2513 = vmatpush1.bf16.msra.mxu0 %v1767
    %2514 = vmatprep.subr.bf16.mxu0 %v1772
    %2515 = vmatpush1.bf16.msra.mxu0 %v1771
    %2516 = vmatprep.subr.bf16.mxu0 %v1776
    %2517 = vmatpush1.bf16.msra.mxu0 %v1775
    %2518 = vmatprep.subr.bf16.mxu0 %v1780
    %2519 = vmatpush1.bf16.msra.mxu0 %v1779
    %2520 = vmatprep.subr.bf16.mxu0 %v1784
    %2521 = vmatpush1.bf16.msra.mxu0 %v1783
    %2522 = vmatprep.subr.bf16.mxu0 %v1788
    %2523 = vmatpush1.bf16.msra.mxu0 %v1787
    %2524 = vmatprep.subr.bf16.mxu0 %v1792
    %2525 = vmatpush1.bf16.msra.mxu0 %v1791
    %2526 = vmatprep.subr.bf16.mxu0 %v1796
    %2527 = vmatpush1.bf16.msra.mxu0 %v1795
    %2528 = vmatprep.subr.bf16.mxu0 %v1800
    %2529 = vmatpush1.bf16.msra.mxu0 %v1799
    %2530 = vmatprep.subr.bf16.mxu0 %v1804
    %2531 = vmatpush1.bf16.msra.mxu0 %v1803
    %2532 = vmatprep.subr.bf16.mxu0 %v1808
    %2533 = vmatpush1.bf16.msra.mxu0 %v1807
    %2534 = vmatprep.subr.bf16.mxu0 %v1812
    %2535 = vmatpush1.bf16.msra.mxu0 %v1811
    %2536 = vmatprep.subr.bf16.mxu0 %v1816
    %2537 = vmatpush1.bf16.msra.mxu0 %v1815
    %2538 = vmatprep.subr.bf16.mxu0 %v1820
    %2539 = vmatpush1.bf16.msra.mxu0 %v1819
    %2540 = vmatprep.subr.bf16.mxu0 %v1824
    %2541 = vmatpush1.bf16.msra.mxu0 %v1823
    %2542 = vmatprep.mubr.bf16.mxu0 %v132
    %2543 = vmatmul.mubr.bf16.gmra.mrb[0].mxu0 %v131
    %v2544 = vpop.f32.mrb[0].mxu0
    %v2545 = vadd.f32 %v2502, %v2544
    %v2546 = vpop.f32.mrb[0].mxu0
    %v2547 = vadd.f32 %v2504, %v2546
    %v2548 = vpop.f32.mrb[0].mxu0
    %v2549 = vadd.f32 %v2506, %v2548
    %v2550 = vpop.f32.mrb[0].mxu0
    %v2551 = vadd.f32 %v2508, %v2550
    %2552 = vdwg.mxu0
    %2553 = vmatprep.subr.bf16.mxu0 %v1828
    %2554 = vmatpush1.bf16.msra.mxu0 %v1827
    %2555 = vmatprep.subr.bf16.mxu0 %v1832
    %2556 = vmatpush1.bf16.msra.mxu0 %v1831
    %2557 = vmatprep.subr.bf16.mxu0 %v1836
    %2558 = vmatpush1.bf16.msra.mxu0 %v1835
    %2559 = vmatprep.subr.bf16.mxu0 %v1840
    %2560 = vmatpush1.bf16.msra.mxu0 %v1839
    %2561 = vmatprep.subr.bf16.mxu0 %v1844
    %2562 = vmatpush1.bf16.msra.mxu0 %v1843
    %2563 = vmatprep.subr.bf16.mxu0 %v1848
    %2564 = vmatpush1.bf16.msra.mxu0 %v1847
    %2565 = vmatprep.subr.bf16.mxu0 %v1852
    %2566 = vmatpush1.bf16.msra.mxu0 %v1851
    %2567 = vmatprep.subr.bf16.mxu0 %v1856
    %2568 = vmatpush1.bf16.msra.mxu0 %v1855
    %2569 = vmatprep.subr.bf16.mxu0 %v1860
    %2570 = vmatpush1.bf16.msra.mxu0 %v1859
    %2571 = vmatprep.subr.bf16.mxu0 %v1864
    %2572 = vmatpush1.bf16.msra.mxu0 %v1863
    %2573 = vmatprep.subr.bf16.mxu0 %v1868
    %2574 = vmatpush1.bf16.msra.mxu0 %v1867
    %2575 = vmatprep.subr.bf16.mxu0 %v1872
    %2576 = vmatpush1.bf16.msra.mxu0 %v1871
    %2577 = vmatprep.subr.bf16.mxu0 %v1876
    %2578 = vmatpush1.bf16.msra.mxu0 %v1875
    %2579 = vmatprep.subr.bf16.mxu0 %v1880
    %2580 = vmatpush1.bf16.msra.mxu0 %v1879
    %2581 = vmatprep.subr.bf16.mxu0 %v1884
    %2582 = vmatpush1.bf16.msra.mxu0 %v1883
    %2583 = vmatprep.subr.bf16.mxu0 %v1888
    %2584 = vmatpush1.bf16.msra.mxu0 %v1887
    %2585 = vmatprep.mubr.bf16.mxu0 %v134
    %2586 = vmatmul.mubr.bf16.gmra.mrb[0].mxu0 %v133
    %v2587 = vpop.f32.mrb[0].mxu0
    %v2588 = vadd.f32 %v2545, %v2587
    %v2589 = vpop.f32.mrb[0].mxu0
    %v2590 = vadd.f32 %v2547, %v2589
    %v2591 = vpop.f32.mrb[0].mxu0
    %v2592 = vadd.f32 %v2549, %v2591
    %v2593 = vpop.f32.mrb[0].mxu0
    %v2594 = vadd.f32 %v2551, %v2593
    %2595 = vdwg.mxu0
    %2596 = vmatprep.subr.bf16.mxu0 %v1892
    %2597 = vmatpush1.bf16.msra.mxu0 %v1891
    %2598 = vmatprep.subr.bf16.mxu0 %v1896
    %2599 = vmatpush1.bf16.msra.mxu0 %v1895
    %2600 = vmatprep.subr.bf16.mxu0 %v1900
    %2601 = vmatpush1.bf16.msra.mxu0 %v1899
    %2602 = vmatprep.subr.bf16.mxu0 %v1904
    %2603 = vmatpush1.bf16.msra.mxu0 %v1903
    %2604 = vmatprep.subr.bf16.mxu0 %v1908
    %2605 = vmatpush1.bf16.msra.mxu0 %v1907
    %2606 = vmatprep.subr.bf16.mxu0 %v1912
    %2607 = vmatpush1.bf16.msra.mxu0 %v1911
    %2608 = vmatprep.subr.bf16.mxu0 %v1916
    %2609 = vmatpush1.bf16.msra.mxu0 %v1915
    %2610 = vmatprep.subr.bf16.mxu0 %v1920
    %2611 = vmatpush1.bf16.msra.mxu0 %v1919
    %2612 = vmatprep.subr.bf16.mxu0 %v1924
    %2613 = vmatpush1.bf16.msra.mxu0 %v1923
    %2614 = vmatprep.subr.bf16.mxu0 %v1928
    %2615 = vmatpush1.bf16.msra.mxu0 %v1927
    %2616 = vmatprep.subr.bf16.mxu0 %v1932
    %2617 = vmatpush1.bf16.msra.mxu0 %v1931
    %2618 = vmatprep.subr.bf16.mxu0 %v1936
    %2619 = vmatpush1.bf16.msra.mxu0 %v1935
    %2620 = vmatprep.subr.bf16.mxu0 %v1940
    %2621 = vmatpush1.bf16.msra.mxu0 %v1939
    %2622 = vmatprep.subr.bf16.mxu0 %v1944
    %2623 = vmatpush1.bf16.msra.mxu0 %v1943
    %2624 = vmatprep.subr.bf16.mxu0 %v1948
    %2625 = vmatpush1.bf16.msra.mxu0 %v1947
    %2626 = vmatprep.subr.bf16.mxu0 %v1952
    %2627 = vmatpush1.bf16.msra.mxu0 %v1951
    %2628 = vmatprep.mubr.bf16.mxu0 %v136
    %2629 = vmatmul.mubr.bf16.gmra.mrb[0].mxu0 %v135
    %v2630 = vpop.f32.mrb[0].mxu0
    %v2631 = vadd.f32 %v2588, %v2630
    %v2632 = vpop.f32.mrb[0].mxu0
    %v2633 = vadd.f32 %v2590, %v2632
    %v2634 = vpop.f32.mrb[0].mxu0
    %v2635 = vadd.f32 %v2592, %v2634
    %v2636 = vpop.f32.mrb[0].mxu0
    %v2637 = vadd.f32 %v2594, %v2636
    %2638 = vdwg.mxu0
    %2639 = vmatprep.subr.bf16.mxu0 %v1956
    %2640 = vmatpush1.bf16.msra.mxu0 %v1955
    %2641 = vmatprep.subr.bf16.mxu0 %v1960
    %2642 = vmatpush1.bf16.msra.mxu0 %v1959
    %2643 = vmatprep.subr.bf16.mxu0 %v1964
    %2644 = vmatpush1.bf16.msra.mxu0 %v1963
    %2645 = vmatprep.subr.bf16.mxu0 %v1968
    %2646 = vmatpush1.bf16.msra.mxu0 %v1967
    %2647 = vmatprep.subr.bf16.mxu0 %v1972
    %2648 = vmatpush1.bf16.msra.mxu0 %v1971
    %2649 = vmatprep.subr.bf16.mxu0 %v1976
    %2650 = vmatpush1.bf16.msra.mxu0 %v1975
    %2651 = vmatprep.subr.bf16.mxu0 %v1980
    %2652 = vmatpush1.bf16.msra.mxu0 %v1979
    %2653 = vmatprep.subr.bf16.mxu0 %v1984
    %2654 = vmatpush1.bf16.msra.mxu0 %v1983
    %2655 = vmatprep.subr.bf16.mxu0 %v1988
    %2656 = vmatpush1.bf16.msra.mxu0 %v1987
    %2657 = vmatprep.subr.bf16.mxu0 %v1992
    %2658 = vmatpush1.bf16.msra.mxu0 %v1991
    %2659 = vmatprep.subr.bf16.mxu0 %v1996
    %2660 = vmatpush1.bf16.msra.mxu0 %v1995
    %2661 = vmatprep.subr.bf16.mxu0 %v2000
    %2662 = vmatpush1.bf16.msra.mxu0 %v1999
    %2663 = vmatprep.subr.bf16.mxu0 %v2004
    %2664 = vmatpush1.bf16.msra.mxu0 %v2003
    %2665 = vmatprep.subr.bf16.mxu0 %v2008
    %2666 = vmatpush1.bf16.msra.mxu0 %v2007
    %2667 = vmatprep.subr.bf16.mxu0 %v2012
    %2668 = vmatpush1.bf16.msra.mxu0 %v2011
    %2669 = vmatprep.subr.bf16.mxu0 %v2016
    %2670 = vmatpush1.bf16.msra.mxu0 %v2015
    %2671 = vmatprep.mubr.bf16.mxu0 %v138
    %2672 = vmatmul.mubr.bf16.gmra.mrb[0].mxu0 %v137
    %v2673 = vpop.f32.mrb[0].mxu0
    %v2674 = vadd.f32 %v2631, %v2673
    %v2675 = vpop.f32.mrb[0].mxu0
    %v2676 = vadd.f32 %v2633, %v2675
    %v2677 = vpop.f32.mrb[0].mxu0
    %v2678 = vadd.f32 %v2635, %v2677
    %v2679 = vpop.f32.mrb[0].mxu0
    %v2680 = vadd.f32 %v2637, %v2679
    %2681 = vdwg.mxu0
    %2682 = vmatprep.subr.bf16.mxu0 %v2020
    %2683 = vmatpush1.bf16.msra.mxu0 %v2019
    %2684 = vmatprep.subr.bf16.mxu0 %v2024
    %2685 = vmatpush1.bf16.msra.mxu0 %v2023
    %2686 = vmatprep.subr.bf16.mxu0 %v2028
    %2687 = vmatpush1.bf16.msra.mxu0 %v2027
    %2688 = vmatprep.subr.bf16.mxu0 %v2032
    %2689 = vmatpush1.bf16.msra.mxu0 %v2031
    %2690 = vmatprep.subr.bf16.mxu0 %v2036
    %2691 = vmatpush1.bf16.msra.mxu0 %v2035
    %2692 = vmatprep.subr.bf16.mxu0 %v2040
    %2693 = vmatpush1.bf16.msra.mxu0 %v2039
    %2694 = vmatprep.subr.bf16.mxu0 %v2044
    %2695 = vmatpush1.bf16.msra.mxu0 %v2043
    %2696 = vmatprep.subr.bf16.mxu0 %v2048
    %2697 = vmatpush1.bf16.msra.mxu0 %v2047
    %2698 = vmatprep.subr.bf16.mxu0 %v2052
    %2699 = vmatpush1.bf16.msra.mxu0 %v2051
    %2700 = vmatprep.subr.bf16.mxu0 %v2056
    %2701 = vmatpush1.bf16.msra.mxu0 %v2055
    %2702 = vmatprep.subr.bf16.mxu0 %v2060
    %2703 = vmatpush1.bf16.msra.mxu0 %v2059
    %2704 = vmatprep.subr.bf16.mxu0 %v2064
    %2705 = vmatpush1.bf16.msra.mxu0 %v2063
    %2706 = vmatprep.subr.bf16.mxu0 %v2068
    %2707 = vmatpush1.bf16.msra.mxu0 %v2067
    %2708 = vmatprep.subr.bf16.mxu0 %v2072
    %2709 = vmatpush1.bf16.msra.mxu0 %v2071
    %2710 = vmatprep.subr.bf16.mxu0 %v2076
    %2711 = vmatpush1.bf16.msra.mxu0 %v2075
    %2712 = vmatprep.subr.bf16.mxu0 %v2080
    %2713 = vmatpush1.bf16.msra.mxu0 %v2079
    %2714 = vmatprep.mubr.bf16.mxu0 %v140
    %2715 = vmatmul.mubr.bf16.gmra.mrb[0].mxu0 %v139
    %v2716 = vpop.f32.mrb[0].mxu0
    %v2717 = vadd.f32 %v2674, %v2716
    %v2718 = vpop.f32.mrb[0].mxu0
    %v2719 = vadd.f32 %v2676, %v2718
    %v2720 = vpop.f32.mrb[0].mxu0
    %v2721 = vadd.f32 %v2678, %v2720
    %v2722 = vpop.f32.mrb[0].mxu0
    %v2723 = vadd.f32 %v2680, %v2722
    %2724 = vdwg.mxu0
    %2725 = vmatprep.subr.bf16.mxu0 %v1702
    %2726 = vmatpush1.bf16.msra.mxu0 %v1701
    %2727 = vmatprep.subr.bf16.mxu0 %v1706
    %2728 = vmatpush1.bf16.msra.mxu0 %v1705
    %2729 = vmatprep.subr.bf16.mxu0 %v1710
    %2730 = vmatpush1.bf16.msra.mxu0 %v1709
    %2731 = vmatprep.subr.bf16.mxu0 %v1714
    %2732 = vmatpush1.bf16.msra.mxu0 %v1713
    %2733 = vmatprep.subr.bf16.mxu0 %v1718
    %2734 = vmatpush1.bf16.msra.mxu0 %v1717
    %2735 = vmatprep.subr.bf16.mxu0 %v1722
    %2736 = vmatpush1.bf16.msra.mxu0 %v1721
    %2737 = vmatprep.subr.bf16.mxu0 %v1726
    %2738 = vmatpush1.bf16.msra.mxu0 %v1725
    %2739 = vmatprep.subr.bf16.mxu0 %v1730
    %2740 = vmatpush1.bf16.msra.mxu0 %v1729
    %2741 = vmatprep.subr.bf16.mxu0 %v1734
    %2742 = vmatpush1.bf16.msra.mxu0 %v1733
    %2743 = vmatprep.subr.bf16.mxu0 %v1738
    %2744 = vmatpush1.bf16.msra.mxu0 %v1737
    %2745 = vmatprep.subr.bf16.mxu0 %v1742
    %2746 = vmatpush1.bf16.msra.mxu0 %v1741
    %2747 = vmatprep.subr.bf16.mxu0 %v1746
    %2748 = vmatpush1.bf16.msra.mxu0 %v1745
    %2749 = vmatprep.subr.bf16.mxu0 %v1750
    %2750 = vmatpush1.bf16.msra.mxu0 %v1749
    %2751 = vmatprep.subr.bf16.mxu0 %v1754
    %2752 = vmatpush1.bf16.msra.mxu0 %v1753
    %2753 = vmatprep.subr.bf16.mxu0 %v1758
    %2754 = vmatpush1.bf16.msra.mxu0 %v1757
    %2755 = vmatprep.subr.bf16.mxu0 %v1762
    %2756 = vmatpush1.bf16.msra.mxu0 %v1761
    %2757 = vmatprep.mubr.bf16.mxu0 %v130
    %2758 = vmatmul.mubr.bf16.gmra.mrb[0].mxu0 %v129
    %v2759 = vpop.f32.mrb[0].mxu0
    %v2760 = vadd.f32 %v538, %v2759
    %v2761 = vpop.f32.mrb[0].mxu0
    %v2762 = vadd.f32 %v542, %v2761
    %v2763 = vpop.f32.mrb[0].mxu0
    %v2764 = vadd.f32 %v538, %v2763
    %v2765 = vpop.f32.mrb[0].mxu0
    %v2766 = vadd.f32 %v542, %v2765
    %2767 = vdwg.mxu0
    %2768 = vmatprep.subr.bf16.mxu0 %v1766
    %2769 = vmatpush1.bf16.msra.mxu0 %v1765
    %2770 = vmatprep.subr.bf16.mxu0 %v1770
    %2771 = vmatpush1.bf16.msra.mxu0 %v1769
    %2772 = vmatprep.subr.bf16.mxu0 %v1774
    %2773 = vmatpush1.bf16.msra.mxu0 %v1773
    %2774 = vmatprep.subr.bf16.mxu0 %v1778
    %2775 = vmatpush1.bf16.msra.mxu0 %v1777
    %2776 = vmatprep.subr.bf16.mxu0 %v1782
    %2777 = vmatpush1.bf16.msra.mxu0 %v1781
    %2778 = vmatprep.subr.bf16.mxu0 %v1786
    %2779 = vmatpush1.bf16.msra.mxu0 %v1785
    %2780 = vmatprep.subr.bf16.mxu0 %v1790
    %2781 = vmatpush1.bf16.msra.mxu0 %v1789
    %2782 = vmatprep.subr.bf16.mxu0 %v1794
    %2783 = vmatpush1.bf16.msra.mxu0 %v1793
    %2784 = vmatprep.subr.bf16.mxu0 %v1798
    %2785 = vmatpush1.bf16.msra.mxu0 %v1797
    %2786 = vmatprep.subr.bf16.mxu0 %v1802
    %2787 = vmatpush1.bf16.msra.mxu0 %v1801
    %2788 = vmatprep.subr.bf16.mxu0 %v1806
    %2789 = vmatpush1.bf16.msra.mxu0 %v1805
    %2790 = vmatprep.subr.bf16.mxu0 %v1810
    %2791 = vmatpush1.bf16.msra.mxu0 %v1809
    %2792 = vmatprep.subr.bf16.mxu0 %v1814
    %2793 = vmatpush1.bf16.msra.mxu0 %v1813
    %2794 = vmatprep.subr.bf16.mxu0 %v1818
    %2795 = vmatpush1.bf16.msra.mxu0 %v1817
    %2796 = vmatprep.subr.bf16.mxu0 %v1822
    %2797 = vmatpush1.bf16.msra.mxu0 %v1821
    %2798 = vmatprep.subr.bf16.mxu0 %v1826
    %2799 = vmatpush1.bf16.msra.mxu0 %v1825
    %2800 = vmatprep.mubr.bf16.mxu0 %v132
    %2801 = vmatmul.mubr.bf16.gmra.mrb[0].mxu0 %v131
    %v2802 = vpop.f32.mrb[0].mxu0
    %v2803 = vadd.f32 %v2760, %v2802
    %v2804 = vpop.f32.mrb[0].mxu0
    %v2805 = vadd.f32 %v2762, %v2804
    %v2806 = vpop.f32.mrb[0].mxu0
    %v2807 = vadd.f32 %v2764, %v2806
    %v2808 = vpop.f32.mrb[0].mxu0
    %v2809 = vadd.f32 %v2766, %v2808
    %2810 = vdwg.mxu0
    %2811 = vmatprep.subr.bf16.mxu0 %v1830
    %2812 = vmatpush1.bf16.msra.mxu0 %v1829
    %2813 = vmatprep.subr.bf16.mxu0 %v1834
    %2814 = vmatpush1.bf16.msra.mxu0 %v1833
    %2815 = vmatprep.subr.bf16.mxu0 %v1838
    %2816 = vmatpush1.bf16.msra.mxu0 %v1837
    %2817 = vmatprep.subr.bf16.mxu0 %v1842
    %2818 = vmatpush1.bf16.msra.mxu0 %v1841
    %2819 = vmatprep.subr.bf16.mxu0 %v1846
    %2820 = vmatpush1.bf16.msra.mxu0 %v1845
    %2821 = vmatprep.subr.bf16.mxu0 %v1850
    %2822 = vmatpush1.bf16.msra.mxu0 %v1849
    %2823 = vmatprep.subr.bf16.mxu0 %v1854
    %2824 = vmatpush1.bf16.msra.mxu0 %v1853
    %2825 = vmatprep.subr.bf16.mxu0 %v1858
    %2826 = vmatpush1.bf16.msra.mxu0 %v1857
    %2827 = vmatprep.subr.bf16.mxu0 %v1862
    %2828 = vmatpush1.bf16.msra.mxu0 %v1861
    %2829 = vmatprep.subr.bf16.mxu0 %v1866
    %2830 = vmatpush1.bf16.msra.mxu0 %v1865
    %2831 = vmatprep.subr.bf16.mxu0 %v1870
    %2832 = vmatpush1.bf16.msra.mxu0 %v1869
    %2833 = vmatprep.subr.bf16.mxu0 %v1874
    %2834 = vmatpush1.bf16.msra.mxu0 %v1873
    %2835 = vmatprep.subr.bf16.mxu0 %v1878
    %2836 = vmatpush1.bf16.msra.mxu0 %v1877
    %2837 = vmatprep.subr.bf16.mxu0 %v1882
    %2838 = vmatpush1.bf16.msra.mxu0 %v1881
    %2839 = vmatprep.subr.bf16.mxu0 %v1886
    %2840 = vmatpush1.bf16.msra.mxu0 %v1885
    %2841 = vmatprep.subr.bf16.mxu0 %v1890
    %2842 = vmatpush1.bf16.msra.mxu0 %v1889
    %2843 = vmatprep.mubr.bf16.mxu0 %v134
    %2844 = vmatmul.mubr.bf16.gmra.mrb[0].mxu0 %v133
    %v2845 = vpop.f32.mrb[0].mxu0
    %v2846 = vadd.f32 %v2803, %v2845
    %v2847 = vpop.f32.mrb[0].mxu0
    %v2848 = vadd.f32 %v2805, %v2847
    %v2849 = vpop.f32.mrb[0].mxu0
    %v2850 = vadd.f32 %v2807, %v2849
    %v2851 = vpop.f32.mrb[0].mxu0
    %v2852 = vadd.f32 %v2809, %v2851
    %2853 = vdwg.mxu0
    %2854 = vmatprep.subr.bf16.mxu0 %v1894
    %2855 = vmatpush1.bf16.msra.mxu0 %v1893
    %2856 = vmatprep.subr.bf16.mxu0 %v1898
    %2857 = vmatpush1.bf16.msra.mxu0 %v1897
    %2858 = vmatprep.subr.bf16.mxu0 %v1902
    %2859 = vmatpush1.bf16.msra.mxu0 %v1901
    %2860 = vmatprep.subr.bf16.mxu0 %v1906
    %2861 = vmatpush1.bf16.msra.mxu0 %v1905
    %2862 = vmatprep.subr.bf16.mxu0 %v1910
    %2863 = vmatpush1.bf16.msra.mxu0 %v1909
    %2864 = vmatprep.subr.bf16.mxu0 %v1914
    %2865 = vmatpush1.bf16.msra.mxu0 %v1913
    %2866 = vmatprep.subr.bf16.mxu0 %v1918
    %2867 = vmatpush1.bf16.msra.mxu0 %v1917
    %2868 = vmatprep.subr.bf16.mxu0 %v1922
    %2869 = vmatpush1.bf16.msra.mxu0 %v1921
    %2870 = vmatprep.subr.bf16.mxu0 %v1926
    %2871 = vmatpush1.bf16.msra.mxu0 %v1925
    %2872 = vmatprep.subr.bf16.mxu0 %v1930
    %2873 = vmatpush1.bf16.msra.mxu0 %v1929
    %2874 = vmatprep.subr.bf16.mxu0 %v1934
    %2875 = vmatpush1.bf16.msra.mxu0 %v1933
    %2876 = vmatprep.subr.bf16.mxu0 %v1938
    %2877 = vmatpush1.bf16.msra.mxu0 %v1937
    %2878 = vmatprep.subr.bf16.mxu0 %v1942
    %2879 = vmatpush1.bf16.msra.mxu0 %v1941
    %2880 = vmatprep.subr.bf16.mxu0 %v1946
    %2881 = vmatpush1.bf16.msra.mxu0 %v1945
    %2882 = vmatprep.subr.bf16.mxu0 %v1950
    %2883 = vmatpush1.bf16.msra.mxu0 %v1949
    %2884 = vmatprep.subr.bf16.mxu0 %v1954
    %2885 = vmatpush1.bf16.msra.mxu0 %v1953
    %2886 = vmatprep.mubr.bf16.mxu0 %v136
    %2887 = vmatmul.mubr.bf16.gmra.mrb[0].mxu0 %v135
    %v2888 = vpop.f32.mrb[0].mxu0
    %v2889 = vadd.f32 %v2846, %v2888
    %v2890 = vpop.f32.mrb[0].mxu0
    %v2891 = vadd.f32 %v2848, %v2890
    %v2892 = vpop.f32.mrb[0].mxu0
    %v2893 = vadd.f32 %v2850, %v2892
    %v2894 = vpop.f32.mrb[0].mxu0
    %v2895 = vadd.f32 %v2852, %v2894
    %2896 = vdwg.mxu0
    %2897 = vmatprep.subr.bf16.mxu0 %v1958
    %2898 = vmatpush1.bf16.msra.mxu0 %v1957
    %2899 = vmatprep.subr.bf16.mxu0 %v1962
    %2900 = vmatpush1.bf16.msra.mxu0 %v1961
    %2901 = vmatprep.subr.bf16.mxu0 %v1966
    %2902 = vmatpush1.bf16.msra.mxu0 %v1965
    %2903 = vmatprep.subr.bf16.mxu0 %v1970
    %2904 = vmatpush1.bf16.msra.mxu0 %v1969
    %2905 = vmatprep.subr.bf16.mxu0 %v1974
    %2906 = vmatpush1.bf16.msra.mxu0 %v1973
    %2907 = vmatprep.subr.bf16.mxu0 %v1978
    %2908 = vmatpush1.bf16.msra.mxu0 %v1977
    %2909 = vmatprep.subr.bf16.mxu0 %v1982
    %2910 = vmatpush1.bf16.msra.mxu0 %v1981
    %2911 = vmatprep.subr.bf16.mxu0 %v1986
    %2912 = vmatpush1.bf16.msra.mxu0 %v1985
    %2913 = vmatprep.subr.bf16.mxu0 %v1990
    %2914 = vmatpush1.bf16.msra.mxu0 %v1989
    %2915 = vmatprep.subr.bf16.mxu0 %v1994
    %2916 = vmatpush1.bf16.msra.mxu0 %v1993
    %2917 = vmatprep.subr.bf16.mxu0 %v1998
    %2918 = vmatpush1.bf16.msra.mxu0 %v1997
    %2919 = vmatprep.subr.bf16.mxu0 %v2002
    %2920 = vmatpush1.bf16.msra.mxu0 %v2001
    %2921 = vmatprep.subr.bf16.mxu0 %v2006
    %2922 = vmatpush1.bf16.msra.mxu0 %v2005
    %2923 = vmatprep.subr.bf16.mxu0 %v2010
    %2924 = vmatpush1.bf16.msra.mxu0 %v2009
    %2925 = vmatprep.subr.bf16.mxu0 %v2014
    %2926 = vmatpush1.bf16.msra.mxu0 %v2013
    %2927 = vmatprep.subr.bf16.mxu0 %v2018
    %2928 = vmatpush1.bf16.msra.mxu0 %v2017
    %2929 = vmatprep.mubr.bf16.mxu0 %v138
    %2930 = vmatmul.mubr.bf16.gmra.mrb[0].mxu0 %v137
    %v2931 = vpop.f32.mrb[0].mxu0
    %v2932 = vadd.f32 %v2889, %v2931
    %v2933 = vpop.f32.mrb[0].mxu0
    %v2934 = vadd.f32 %v2891, %v2933
    %v2935 = vpop.f32.mrb[0].mxu0
    %v2936 = vadd.f32 %v2893, %v2935
    %v2937 = vpop.f32.mrb[0].mxu0
    %v2938 = vadd.f32 %v2895, %v2937
    %2939 = vdwg.mxu0
    %2940 = vmatprep.subr.bf16.mxu0 %v2022
    %2941 = vmatpush1.bf16.msra.mxu0 %v2021
    %2942 = vmatprep.subr.bf16.mxu0 %v2026
    %2943 = vmatpush1.bf16.msra.mxu0 %v2025
    %2944 = vmatprep.subr.bf16.mxu0 %v2030
    %2945 = vmatpush1.bf16.msra.mxu0 %v2029
    %2946 = vmatprep.subr.bf16.mxu0 %v2034
    %2947 = vmatpush1.bf16.msra.mxu0 %v2033
    %2948 = vmatprep.subr.bf16.mxu0 %v2038
    %2949 = vmatpush1.bf16.msra.mxu0 %v2037
    %2950 = vmatprep.subr.bf16.mxu0 %v2042
    %2951 = vmatpush1.bf16.msra.mxu0 %v2041
    %2952 = vmatprep.subr.bf16.mxu0 %v2046
    %2953 = vmatpush1.bf16.msra.mxu0 %v2045
    %2954 = vmatprep.subr.bf16.mxu0 %v2050
    %2955 = vmatpush1.bf16.msra.mxu0 %v2049
    %2956 = vmatprep.subr.bf16.mxu0 %v2054
    %2957 = vmatpush1.bf16.msra.mxu0 %v2053
    %2958 = vmatprep.subr.bf16.mxu0 %v2058
    %2959 = vmatpush1.bf16.msra.mxu0 %v2057
    %2960 = vmatprep.subr.bf16.mxu0 %v2062
    %2961 = vmatpush1.bf16.msra.mxu0 %v2061
    %2962 = vmatprep.subr.bf16.mxu0 %v2066
    %2963 = vmatpush1.bf16.msra.mxu0 %v2065
    %2964 = vmatprep.subr.bf16.mxu0 %v2070
    %2965 = vmatpush1.bf16.msra.mxu0 %v2069
    %2966 = vmatprep.subr.bf16.mxu0 %v2074
    %2967 = vmatpush1.bf16.msra.mxu0 %v2073
    %2968 = vmatprep.subr.bf16.mxu0 %v2078
    %2969 = vmatpush1.bf16.msra.mxu0 %v2077
    %2970 = vmatprep.subr.bf16.mxu0 %v2082
    %2971 = vmatpush1.bf16.msra.mxu0 %v2081
    %2972 = vmatprep.mubr.bf16.mxu0 %v140
    %2973 = vmatmul.mubr.bf16.gmra.mrb[0].mxu0 %v139
    %v2974 = vpop.f32.mrb[0].mxu0
    %v2975 = vadd.f32 %v2932, %v2974
    %v2976 = vpop.f32.mrb[0].mxu0
    %v2977 = vadd.f32 %v2934, %v2976
    %v2978 = vpop.f32.mrb[0].mxu0
    %v2979 = vadd.f32 %v2936, %v2978
    %v2980 = vpop.f32.mrb[0].mxu0
    %v2981 = vadd.f32 %v2938, %v2980
    %2982 = vdwg.mxu0
    %v2983 = vmax.f32 %v2717, 0.0
    %v2984 = vmax.f32 %v2719, 0.0
    %v2985 = vmax.f32 %v2975, 0.0
    %v2986 = vmax.f32 %v2977, 0.0
    %v2987 = vmax.f32 %v2721, 0.0
    %v2988 = vmax.f32 %v2723, 0.0
    %v2989 = vmax.f32 %v2979, 0.0
    %v2990 = vmax.f32 %v2981, 0.0
    %v2991 = vpack.c.bf16 %v2987, %v2983
    %v2992 = vpack.c.bf16 %v2988, %v2984
    %v2993 = vpack.c.bf16 %v2989, %v2985
    %v2994 = vpack.c.bf16 %v2990, %v2986
    %v2995 = vld [vmem:[#allocation9] sm:$0xf]
    %v2996 = vld [vmem:[#allocation9 + $0x4] sm:$0xf]
    %v2997 = vld [vmem:[#allocation9 + $0x8] sm:$0xf]
    %v2998 = vld [vmem:[#allocation9 + $0xc] sm:$0xf]
    %v2999 = vld [vmem:[#allocation9 + $0x10] sm:$0xf]
    %v3000 = vld [vmem:[#allocation9 + $0x14] sm:$0xf]
    %v3001 = vld [vmem:[#allocation9 + $0x18] sm:$0xf]
    %v3002 = vld [vmem:[#allocation9 + $0x1c] sm:$0xf]
    %v3003 = vld [vmem:[#allocation9 + $0x20] sm:$0xf]
    %v3004 = vld [vmem:[#allocation9 + $0x24] sm:$0xf]
    %v3005 = vld [vmem:[#allocation9 + $0x28] sm:$0xf]
    %v3006 = vld [vmem:[#allocation9 + $0x2c] sm:$0xf]
    %v3007 = vld [vmem:[#allocation9 + $0x30] sm:$0xf]
    %v3008 = vld [vmem:[#allocation9 + $0x34] sm:$0xf]
    %v3009 = vld [vmem:[#allocation9 + $0x38] sm:$0xf]
    %v3010 = vld [vmem:[#allocation9 + $0x3c] sm:$0xf]
    %v3011 = vld [vmem:[#allocation9 + $0x40] sm:$0xf]
    %v3012 = vld [vmem:[#allocation9 + $0x44] sm:$0xf]
    %v3013 = vld [vmem:[#allocation9 + $0x48] sm:$0xf]
    %v3014 = vld [vmem:[#allocation9 + $0x4c] sm:$0xf]
    %v3015 = vld [vmem:[#allocation9 + $0x50] sm:$0xf]
    %v3016 = vld [vmem:[#allocation9 + $0x54] sm:$0xf]
    %v3017 = vld [vmem:[#allocation9 + $0x58] sm:$0xf]
    %v3018 = vld [vmem:[#allocation9 + $0x5c] sm:$0xf]
    %v3019 = vld [vmem:[#allocation9 + $0x60] sm:$0xf]
    %v3020 = vld [vmem:[#allocation9 + $0x64] sm:$0xf]
    %v3021 = vld [vmem:[#allocation9 + $0x68] sm:$0xf]
    %v3022 = vld [vmem:[#allocation9 + $0x6c] sm:$0xf]
    %v3023 = vld [vmem:[#allocation9 + $0x70] sm:$0xf]
    %v3024 = vld [vmem:[#allocation9 + $0x74] sm:$0xf]
    %v3025 = vld [vmem:[#allocation9 + $0x78] sm:$0xf]
    %v3026 = vld [vmem:[#allocation9 + $0x7c] sm:$0xf]
    %v3027 = vld [vmem:[#allocation9 + $0x80] sm:$0xf]
    %v3028 = vld [vmem:[#allocation9 + $0x84] sm:$0xf]
    %v3029 = vld [vmem:[#allocation9 + $0x88] sm:$0xf]
    %v3030 = vld [vmem:[#allocation9 + $0x8c] sm:$0xf]
    %v3031 = vld [vmem:[#allocation9 + $0x90] sm:$0xf]
    %v3032 = vld [vmem:[#allocation9 + $0x94] sm:$0xf]
    %v3033 = vld [vmem:[#allocation9 + $0x98] sm:$0xf]
    %v3034 = vld [vmem:[#allocation9 + $0x9c] sm:$0xf]
    %v3035 = vld [vmem:[#allocation9 + $0xa0] sm:$0xf]
    %v3036 = vld [vmem:[#allocation9 + $0xa4] sm:$0xf]
    %v3037 = vld [vmem:[#allocation9 + $0xa8] sm:$0xf]
    %v3038 = vld [vmem:[#allocation9 + $0xac] sm:$0xf]
    %v3039 = vld [vmem:[#allocation9 + $0xb0] sm:$0xf]
    %v3040 = vld [vmem:[#allocation9 + $0xb4] sm:$0xf]
    %v3041 = vld [vmem:[#allocation9 + $0xb8] sm:$0xf]
    %v3042 = vld [vmem:[#allocation9 + $0xbc] sm:$0xf]
    %v3043 = vld [vmem:[#allocation9 + $0xc0] sm:$0xf]
    %v3044 = vld [vmem:[#allocation9 + $0xc4] sm:$0xf]
    %v3045 = vld [vmem:[#allocation9 + $0xc8] sm:$0xf]
    %v3046 = vld [vmem:[#allocation9 + $0xcc] sm:$0xf]
    %v3047 = vld [vmem:[#allocation9 + $0xd0] sm:$0xf]
    %v3048 = vld [vmem:[#allocation9 + $0xd4] sm:$0xf]
    %v3049 = vld [vmem:[#allocation9 + $0xd8] sm:$0xf]
    %v3050 = vld [vmem:[#allocation9 + $0xdc] sm:$0xf]
    %v3051 = vld [vmem:[#allocation9 + $0xe0] sm:$0xf]
    %v3052 = vld [vmem:[#allocation9 + $0xe4] sm:$0xf]
    %v3053 = vld [vmem:[#allocation9 + $0xe8] sm:$0xf]
    %v3054 = vld [vmem:[#allocation9 + $0xec] sm:$0xf]
    %v3055 = vld [vmem:[#allocation9 + $0xf0] sm:$0xf]
    %v3056 = vld [vmem:[#allocation9 + $0xf4] sm:$0xf]
    %v3057 = vld [vmem:[#allocation9 + $0xf8] sm:$0xf]
    %v3058 = vld [vmem:[#allocation9 + $0xfc] sm:$0xf]
    %v3059 = vld [vmem:[#allocation11] sm:$0x1]
    %v3061 = vlaneseq
    %v3062 = vshrl.u32 %v3061, 7
    %v3063 = vsub.s32 0, %v3062
    %v3064 = vrot.slane %v3059, %v3063
    %v3130 = vunpack.c.l.b16 %v2995
    %v3131 = vunpack.c.l.b16 %v2996
    %v3132 = vunpack.c.l.b16 %v2997
    %v3133 = vunpack.c.l.b16 %v2998
    %v3134 = vunpack.c.l.b16 %v2999
    %v3135 = vunpack.c.l.b16 %v3000
    %v3136 = vunpack.c.l.b16 %v3001
    %v3137 = vunpack.c.l.b16 %v3002
    %v3138 = vunpack.c.l.b16 %v3003
    %v3139 = vunpack.c.l.b16 %v3004
    %v3140 = vunpack.c.l.b16 %v3005
    %v3141 = vunpack.c.l.b16 %v3006
    %v3142 = vunpack.c.l.b16 %v3007
    %v3143 = vunpack.c.l.b16 %v3008
    %v3144 = vunpack.c.l.b16 %v3009
    %v3145 = vunpack.c.l.b16 %v3010
    %v3146 = vunpack.c.l.b16 %v3011
    %v3147 = vunpack.c.l.b16 %v3012
    %v3148 = vunpack.c.l.b16 %v3013
    %v3149 = vunpack.c.l.b16 %v3014
    %v3150 = vunpack.c.l.b16 %v3015
    %v3151 = vunpack.c.l.b16 %v3016
    %v3152 = vunpack.c.l.b16 %v3017
    %v3153 = vunpack.c.l.b16 %v3018
    %v3154 = vunpack.c.l.b16 %v3019
    %v3155 = vunpack.c.l.b16 %v3020
    %v3156 = vunpack.c.l.b16 %v3021
    %v3157 = vunpack.c.l.b16 %v3022
    %v3158 = vunpack.c.l.b16 %v3023
    %v3159 = vunpack.c.l.b16 %v3024
    %v3160 = vunpack.c.l.b16 %v3025
    %v3161 = vunpack.c.l.b16 %v3026
    %v3162 = vunpack.c.l.b16 %v3027
    %v3163 = vunpack.c.l.b16 %v3028
    %v3164 = vunpack.c.l.b16 %v3029
    %v3165 = vunpack.c.l.b16 %v3030
    %v3166 = vunpack.c.l.b16 %v3031
    %v3167 = vunpack.c.l.b16 %v3032
    %v3168 = vunpack.c.l.b16 %v3033
    %v3169 = vunpack.c.l.b16 %v3034
    %v3170 = vunpack.c.l.b16 %v3035
    %v3171 = vunpack.c.l.b16 %v3036
    %v3172 = vunpack.c.l.b16 %v3037
    %v3173 = vunpack.c.l.b16 %v3038
    %v3174 = vunpack.c.l.b16 %v3039
    %v3175 = vunpack.c.l.b16 %v3040
    %v3176 = vunpack.c.l.b16 %v3041
    %v3177 = vunpack.c.l.b16 %v3042
    %v3178 = vunpack.c.l.b16 %v3043
    %v3179 = vunpack.c.l.b16 %v3044
    %v3180 = vunpack.c.l.b16 %v3045
    %v3181 = vunpack.c.l.b16 %v3046
    %v3182 = vunpack.c.l.b16 %v3047
    %v3183 = vunpack.c.l.b16 %v3048
    %v3184 = vunpack.c.l.b16 %v3049
    %v3185 = vunpack.c.l.b16 %v3050
    %v3186 = vunpack.c.l.b16 %v3051
    %v3187 = vunpack.c.l.b16 %v3052
    %v3188 = vunpack.c.l.b16 %v3053
    %v3189 = vunpack.c.l.b16 %v3054
    %v3190 = vunpack.c.l.b16 %v3055
    %v3191 = vunpack.c.l.b16 %v3056
    %v3192 = vunpack.c.l.b16 %v3057
    %v3193 = vunpack.c.l.b16 %v3058
    %v3194 = vpack.c.b16 %v3131, %v3130
    %v3195 = vpack.c.b16 %v3133, %v3132
    %v3196 = vpack.c.b16 %v3135, %v3134
    %v3197 = vpack.c.b16 %v3137, %v3136
    %v3198 = vpack.c.b16 %v3139, %v3138
    %v3199 = vpack.c.b16 %v3141, %v3140
    %v3200 = vpack.c.b16 %v3143, %v3142
    %v3201 = vpack.c.b16 %v3145, %v3144
    %v3202 = vpack.c.b16 %v3147, %v3146
    %v3203 = vpack.c.b16 %v3149, %v3148
    %v3204 = vpack.c.b16 %v3151, %v3150
    %v3205 = vpack.c.b16 %v3153, %v3152
    %v3206 = vpack.c.b16 %v3155, %v3154
    %v3207 = vpack.c.b16 %v3157, %v3156
    %v3208 = vpack.c.b16 %v3159, %v3158
    %v3209 = vpack.c.b16 %v3161, %v3160
    %v3210 = vpack.c.b16 %v3163, %v3162
    %v3211 = vpack.c.b16 %v3165, %v3164
    %v3212 = vpack.c.b16 %v3167, %v3166
    %v3213 = vpack.c.b16 %v3169, %v3168
    %v3214 = vpack.c.b16 %v3171, %v3170
    %v3215 = vpack.c.b16 %v3173, %v3172
    %v3216 = vpack.c.b16 %v3175, %v3174
    %v3217 = vpack.c.b16 %v3177, %v3176
    %v3218 = vpack.c.b16 %v3179, %v3178
    %v3219 = vpack.c.b16 %v3181, %v3180
    %v3220 = vpack.c.b16 %v3183, %v3182
    %v3221 = vpack.c.b16 %v3185, %v3184
    %v3222 = vpack.c.b16 %v3187, %v3186
    %v3223 = vpack.c.b16 %v3189, %v3188
    %v3224 = vpack.c.b16 %v3191, %v3190
    %v3225 = vpack.c.b16 %v3193, %v3192
    %3258 = vmatprep.subr.bf16.mxu0 0
    %3259 = vmatpush1.bf16.msra.mxu0 %v3194
    %3260 = vmatprep.subr.bf16.mxu0 0
    %3261 = vmatpush1.bf16.msra.mxu0 %v3195
    %3262 = vmatprep.subr.bf16.mxu0 0
    %3263 = vmatpush1.bf16.msra.mxu0 %v3196
    %3264 = vmatprep.subr.bf16.mxu0 0
    %3265 = vmatpush1.bf16.msra.mxu0 %v3197
    %3266 = vmatprep.subr.bf16.mxu0 0
    %3267 = vmatpush1.bf16.msra.mxu0 %v3198
    %3268 = vmatprep.subr.bf16.mxu0 0
    %3269 = vmatpush1.bf16.msra.mxu0 %v3199
    %3270 = vmatprep.subr.bf16.mxu0 0
    %3271 = vmatpush1.bf16.msra.mxu0 %v3200
    %3272 = vmatprep.subr.bf16.mxu0 0
    %3273 = vmatpush1.bf16.msra.mxu0 %v3201
    %3274 = vmatprep.subr.bf16.mxu0 0
    %3275 = vmatpush1.bf16.msra.mxu0 %v3202
    %3276 = vmatprep.subr.bf16.mxu0 0
    %3277 = vmatpush1.bf16.msra.mxu0 %v3203
    %3278 = vmatprep.subr.bf16.mxu0 0
    %3279 = vmatpush1.bf16.msra.mxu0 %v3204
    %3280 = vmatprep.subr.bf16.mxu0 0
    %3281 = vmatpush1.bf16.msra.mxu0 %v3205
    %3282 = vmatprep.subr.bf16.mxu0 0
    %3283 = vmatpush1.bf16.msra.mxu0 %v3206
    %3284 = vmatprep.subr.bf16.mxu0 0
    %3285 = vmatpush1.bf16.msra.mxu0 %v3207
    %3286 = vmatprep.subr.bf16.mxu0 0
    %3287 = vmatpush1.bf16.msra.mxu0 %v3208
    %3288 = vmatprep.subr.bf16.mxu0 0
    %3289 = vmatpush1.bf16.msra.mxu0 %v3209
    %3290 = vmatprep.mubr.bf16.mxu0 %v2992
    %3291 = vmatmul.mubr.bf16.gmra.mrb[0].mxu0 %v2991
    %v3292 = vpop.f32.mrb[0].mxu0
    %v3293 = vadd.f32 %v3064, %v3292
    %v3294 = vpop.f32.mrb[0].mxu0
    %v3295 = vpop.f32.mrb[0].mxu0
    %v3296 = vadd.f32 %v3064, %v3295
    %v3297 = vpop.f32.mrb[0].mxu0
    %3298 = vdwg.mxu0
    %3299 = vmatprep.subr.bf16.mxu0 0
    %3300 = vmatpush1.bf16.msra.mxu0 %v3210
    %3301 = vmatprep.subr.bf16.mxu0 0
    %3302 = vmatpush1.bf16.msra.mxu0 %v3211
    %3303 = vmatprep.subr.bf16.mxu0 0
    %3304 = vmatpush1.bf16.msra.mxu0 %v3212
    %3305 = vmatprep.subr.bf16.mxu0 0
    %3306 = vmatpush1.bf16.msra.mxu0 %v3213
    %3307 = vmatprep.subr.bf16.mxu0 0
    %3308 = vmatpush1.bf16.msra.mxu0 %v3214
    %3309 = vmatprep.subr.bf16.mxu0 0
    %3310 = vmatpush1.bf16.msra.mxu0 %v3215
    %3311 = vmatprep.subr.bf16.mxu0 0
    %3312 = vmatpush1.bf16.msra.mxu0 %v3216
    %3313 = vmatprep.subr.bf16.mxu0 0
    %3314 = vmatpush1.bf16.msra.mxu0 %v3217
    %3315 = vmatprep.subr.bf16.mxu0 0
    %3316 = vmatpush1.bf16.msra.mxu0 %v3218
    %3317 = vmatprep.subr.bf16.mxu0 0
    %3318 = vmatpush1.bf16.msra.mxu0 %v3219
    %3319 = vmatprep.subr.bf16.mxu0 0
    %3320 = vmatpush1.bf16.msra.mxu0 %v3220
    %3321 = vmatprep.subr.bf16.mxu0 0
    %3322 = vmatpush1.bf16.msra.mxu0 %v3221
    %3323 = vmatprep.subr.bf16.mxu0 0
    %3324 = vmatpush1.bf16.msra.mxu0 %v3222
    %3325 = vmatprep.subr.bf16.mxu0 0
    %3326 = vmatpush1.bf16.msra.mxu0 %v3223
    %3327 = vmatprep.subr.bf16.mxu0 0
    %3328 = vmatpush1.bf16.msra.mxu0 %v3224
    %3329 = vmatprep.subr.bf16.mxu0 0
    %3330 = vmatpush1.bf16.msra.mxu0 %v3225
    %3331 = vmatprep.mubr.bf16.mxu0 %v2994
    %3332 = vmatmul.mubr.bf16.gmra.mrb[0].mxu0 %v2993
    %v3333 = vpop.f32.mrb[0].mxu0
    %v3334 = vadd.f32 %v3293, %v3333
    %v3335 = vpop.f32.mrb[0].mxu0
    %v3336 = vpop.f32.mrb[0].mxu0
    %v3337 = vadd.f32 %v3296, %v3336
    %v3338 = vpop.f32.mrb[0].mxu0
    %3339 = vdwg.mxu0
    %v3340 = vmax.f32 %v3334, 0.0
    %v3341 = vmax.f32 %v3337, 0.0
    %v3342 = vld [vmem:[#allocation12] sm:$0x1]
    %v3344 = vlaneseq
    %v3345 = vshrl.u32 %v3344, 7
    %v3346 = vsub.s32 0, %v3345
    %v3347 = vrot.slane %v3342, %v3346
    %v3349 = vmul.f32 %v3340, %v3347
    %v3350 = vmul.f32 %v3341, %v3347
    %3351 = vadd.xlane.f32.xlu0 %v3349
    %v3352 = vpop.xlane.xlu0 %3351
    %3353 = vadd.xlane.f32.xlu0 %v3350
    %v3354 = vpop.xlane.xlu0 %3353
    %3355 = vxpose.xlu0.b32.start [1/16] %v3352, 128
    %3356 = vxpose.xlu0.b32.cont [2/16] %v3354, 128
    %3357 = vxpose.xlu0.b32.cont [3/16] 0.0, 128
    %3358 = vxpose.xlu0.b32.cont [4/16] 0.0, 128
    %3359 = vxpose.xlu0.b32.cont [5/16] 0.0, 128
    %3360 = vxpose.xlu0.b32.cont [6/16] 0.0, 128
    %3361 = vxpose.xlu0.b32.cont [7/16] 0.0, 128
    %3362 = vxpose.xlu0.b32.cont [8/16] 0.0, 128
    %3363 = vxpose.xlu0.b32.cont [9/16] 0.0, 128
    %3364 = vxpose.xlu0.b32.cont [10/16] 0.0, 128
    %3365 = vxpose.xlu0.b32.cont [11/16] 0.0, 128
    %3366 = vxpose.xlu0.b32.cont [12/16] 0.0, 128
    %3367 = vxpose.xlu0.b32.cont [13/16] 0.0, 128
    %3368 = vxpose.xlu0.b32.cont [14/16] 0.0, 128
    %3369 = vxpose.xlu0.b32.cont [15/16] 0.0, 128
    %3370 = vxpose.xlu0.b32.end [16/16] 0.0, 128
    %v3371 = vpop.trf.xlu0
    %v3372 = vpop.trf.xlu0
    %v3373 = vpop.trf.xlu0
    %v3374 = vpop.trf.xlu0
    %v3375 = vpop.trf.xlu0
    %v3376 = vpop.trf.xlu0
    %v3377 = vpop.trf.xlu0
    %v3378 = vpop.trf.xlu0
    %v3379 = vpop.trf.xlu0
    %v3380 = vpop.trf.xlu0
    %v3381 = vpop.trf.xlu0
    %v3382 = vpop.trf.xlu0
    %v3383 = vpop.trf.xlu0
    %v3384 = vpop.trf.xlu0
    %v3385 = vpop.trf.xlu0
    %v3386 = vpop.trf.xlu0
    %s3387 = sld [smem:[#allocation2]]
    %v3388 = vstv %s3387
    %v3389 = vadd.f32 %v3371, %v3388
    %v3390 = vsub.f32 0.0, %v3389
    %v3391 = vmul.f32 %v3390, 1.442695
    %v3392 = vpow.pop %v3391
    %v3393 = vadd.f32 %v3392, 1.0
    %v3394 = vrcp.pop %v3393
    %vm3395 = vcmask 122880
    %3396 = vst.msk [vmem:[#allocation14] sm:$0x1] %vm3395, %v3394
    // Predicated region
    $region54: #{tpu_custom_call.1} parent=1 // pred_check
      _
    $region55: #{tpu_custom_call.1} parent=1 // pred_check_branch
      %3398 = sbr.rel (0) target = $region57
    $region56: #{tpu_custom_call.1} parent=1 // pred_region
      %s3400 = ssub.s32 16, 16
      %3401 = vsyncadd [#allocation5], %s3400
      %s3403 = sshll.u32 [#allocation14], 4
      %s3404 = int_to_ptr.vmem [resolvable:$true] %s3403
      %3406 = dma.vmem_to_hbm [thread:$0]  %s3404, 16, %s7, [#allocation5]
    $region57: #{tpu_custom_call.1} parent=1 // pred_fallthru
      _
    // Predicated region
    $region58: #{tpu_custom_call.1} parent=1 // pred_check
      _
    $region59: #{tpu_custom_call.1} parent=1 // pred_check_branch
      %3408 = sbr.rel (0) target = $region61
    $region60: #{tpu_custom_call.1} parent=1 // pred_region
      %3409 = dma.done [#allocation5], 16
    $region61: #{tpu_custom_call.1} parent=1 // pred_fallthru
      _
    %3410 = vsyncpa [#allocation4], 1
    %3411 = vsyncpa [#allocation7], 1
    %3412 = vsyncpa [#allocation10], 1
    %3413 = vsyncpa [#allocation13], 1
    %3414 = vsyncpa [#allocation5], 1

</llo_original>
